<compile_context>
chip_gen: v7x
topology: tpu7x:2x2x1
jax: 0.10.0
libtpu: 0.0.40
codegen_flags: <defaults>
</compile_context>

<pallas_src>
import functools

import jax
import jax.numpy as jnp
from jax.experimental import pallas as pl
from jax.experimental.pallas import tpu as pltpu


def _round_up(x, m):
    return (x + m - 1) // m * m


# ----------------------------------------------------------------------------
# Pallas kernel 1: out = (relu?)(A @ W + b), tiled over M
# ----------------------------------------------------------------------------
def _matmul_bias_kernel(a_ref, w_ref, b_ref, o_ref, *, relu):
    acc = jnp.dot(a_ref[...], w_ref[...], preferred_element_type=jnp.float32)
    acc = acc + b_ref[...]          # (1, N) broadcasts over rows
    if relu:
        acc = jnp.maximum(acc, 0.0)
    o_ref[...] = acc.astype(o_ref.dtype)


def matmul_bias(a, w, b2, *, relu, tm=256):
    """a: (M, K), w: (K, N), b2: (1, N)  ->  (M, N), all f32.

    Grid is tiled over M only; W / bias are resident, A and the output stream
    through VMEM (double-buffered by the Pallas pipeline).
    """
    M, K = a.shape
    Kw, N = w.shape
    assert K == Kw, (K, Kw)

    tm = min(tm, _round_up(M, 8))          # small problems -> single tile
    Mp = _round_up(M, tm)
    if Mp != M:
        a = jnp.pad(a, ((0, Mp - M), (0, 0)))

    out = pl.pallas_call(
        functools.partial(_matmul_bias_kernel, relu=relu),
        grid=(Mp // tm,),
        in_specs=[
            pl.BlockSpec((tm, K), lambda i: (i, 0)),
            pl.BlockSpec((K, N), lambda i: (0, 0)),
            pl.BlockSpec((1, N), lambda i: (0, 0)),
        ],
        out_specs=pl.BlockSpec((tm, N), lambda i: (i, 0)),
        out_shape=jax.ShapeDtypeStruct((Mp, N), jnp.float32),
        compiler_params=pltpu.CompilerParams(
            dimension_semantics=("parallel",),
            vmem_limit_bytes=64 * 1024 * 1024,
        ),
    )(a, w, b2)
    return out[:M] if Mp != M else out


# ----------------------------------------------------------------------------
# Pallas kernel 2: fused base-MLP + heads
#   out = relu(x @ fc_w + fc_b) @ head_w + head_b     (head_w is lane-dense 128)
# ----------------------------------------------------------------------------
def _mlp_heads_kernel(x_ref, fcw_ref, fcb_ref, hw_ref, hb_ref, o_ref):
    h = jnp.dot(x_ref[...], fcw_ref[...], preferred_element_type=jnp.float32)
    h = jnp.maximum(h + fcb_ref[...], 0.0)
    out = jnp.dot(h, hw_ref[...], preferred_element_type=jnp.float32)
    o_ref[...] = (out + hb_ref[...]).astype(o_ref.dtype)


def mlp_heads(x, fc_w, fc_b2, head_w, head_b2, *, tm=256):
    M, K = x.shape
    Kf, NH = fc_w.shape           # (conv_out, 512)
    NH2, NO = head_w.shape        # (512, 128)
    assert K == Kf and NH == NH2

    tm = min(tm, _round_up(M, 8))
    Mp = _round_up(M, tm)
    if Mp != M:
        x = jnp.pad(x, ((0, Mp - M), (0, 0)))

    out = pl.pallas_call(
        _mlp_heads_kernel,
        grid=(Mp // tm,),
        in_specs=[
            pl.BlockSpec((tm, K), lambda i: (i, 0)),
            pl.BlockSpec((K, NH), lambda i: (0, 0)),
            pl.BlockSpec((1, NH), lambda i: (0, 0)),
            pl.BlockSpec((NH, NO), lambda i: (0, 0)),
            pl.BlockSpec((1, NO), lambda i: (0, 0)),
        ],
        out_specs=pl.BlockSpec((tm, NO), lambda i: (i, 0)),
        out_shape=jax.ShapeDtypeStruct((Mp, NO), jnp.float32),
        compiler_params=pltpu.CompilerParams(
            dimension_semantics=("parallel",),
            vmem_limit_bytes=64 * 1024 * 1024,
        ),
    )(x, fc_w, fc_b2, head_w, head_b2)
    return out[:M]


# ----------------------------------------------------------------------------
# Conv2d (valid, NHWC) = im2col glue + Pallas matmul kernel
# ----------------------------------------------------------------------------
def _im2col_nhwc(x, kh, kw, stride):
    # x: (N, H, W, C) -> (N*OH*OW, kh*kw*C); patch ordering (kh, kw, C).
    N, H, W, C = x.shape
    OH = (H - kh) // stride + 1
    OW = (W - kw) // stride + 1
    cols = []
    for i in range(kh):
        for j in range(kw):
            cols.append(x[:, i:i + stride * OH:stride, j:j + stride * OW:stride, :])
    p = jnp.stack(cols, axis=3)                       # (N, OH, OW, kh*kw, C)
    return p.reshape(N * OH * OW, kh * kw * C), OH, OW


def conv2d_relu_nhwc(x, w2, b2, kh, kw, stride):
    """x: (N, H, W, Cin), w2: (round_up(kh*kw*Cin,128), Cout), b2: (1, Cout)."""
    N = x.shape[0]
    patches, OH, OW = _im2col_nhwc(x, kh, kw, stride)
    Kp = w2.shape[0]
    if patches.shape[1] != Kp:                        # K padded to 128-multiple
        patches = jnp.pad(patches, ((0, 0), (0, Kp - patches.shape[1])))
    out = matmul_bias(patches, w2, b2, relu=True)     # (N*OH*OW, Cout)
    return out.reshape(N, OH, OW, -1)


# ----------------------------------------------------------------------------
# Parameter init (PyTorch layout) and one-time prep into kernel layout
# ----------------------------------------------------------------------------
def _conv_out_dims(state_size):
    _, H, W = state_size
    oh, ow = (H - 8) // 4 + 1, (W - 8) // 4 + 1
    oh, ow = (oh - 4) // 2 + 1, (ow - 4) // 2 + 1
    oh, ow = (oh - 3) // 1 + 1, (ow - 3) // 1 + 1
    return oh, ow


def init_params(key, state_size, action_size):
    c_in = state_size[0]
    oh, ow = _conv_out_dims(state_size)
    conv_out = 64 * oh * ow
    ks = jax.random.split(key, 12)
    s = 0.05
    return {
        "c1_w": s * jax.random.normal(ks[0], (32, c_in, 8, 8), jnp.float32),
        "c1_b": s * jax.random.normal(ks[1], (32,), jnp.float32),
        "c2_w": s * jax.random.normal(ks[2], (64, 32, 4, 4), jnp.float32),
        "c2_b": s * jax.random.normal(ks[3], (64,), jnp.float32),
        "c3_w": s * jax.random.normal(ks[4], (64, 64, 3, 3), jnp.float32),
        "c3_b": s * jax.random.normal(ks[5], (64,), jnp.float32),
        "fc_w": s * jax.random.normal(ks[6], (512, conv_out), jnp.float32),
        "fc_b": s * jax.random.normal(ks[7], (512,), jnp.float32),
        "pi_w": s * jax.random.normal(ks[8], (action_size, 512), jnp.float32),
        "pi_b": s * jax.random.normal(ks[9], (action_size,), jnp.float32),
        "v_w": s * jax.random.normal(ks[10], (1, 512), jnp.float32),
        "v_b": s * jax.random.normal(ks[11], (1,), jnp.float32),
    }


def prepare_params(params, state_size, action_size):
    """One-time conversion of PyTorch-layout weights into kernel-ready layout."""
    oh3, ow3 = _conv_out_dims(state_size)
    c3 = params["c3_w"].shape[0]                      # 64

    def prep_conv(w):
        # (Cout, Cin, kh, kw) -> (round_up(kh*kw*Cin, 128), Cout); row order
        # (kh, kw, Cin) matches the NHWC im2col patch ordering.
        Cout, Cin, kh, kw = w.shape
        K = kh * kw * Cin
        w2 = jnp.transpose(w, (2, 3, 1, 0)).reshape(K, Cout)
        Kp = _round_up(K, 128)
        if Kp != K:
            w2 = jnp.pad(w2, ((0, Kp - K), (0, 0)))
        return w2

    # fc: permute columns once so the NHWC flatten (OH, OW, C) feeds it with
    # results identical to PyTorch's NCHW .view(N, -1) flatten.
    fc_w = params["fc_w"].reshape(512, c3, oh3, ow3)
    fc_w = fc_w.transpose(0, 2, 3, 1).reshape(512, -1).T          # (conv_out, 512)

    # heads: pack policy + value into one lane-dense (512, 128) weight.
    A = action_size
    n_pad = _round_up(A + 1, 128)
    head_w = jnp.concatenate([params["pi_w"], params["v_w"]], axis=0).T   # (512, A+1)
    head_w = jnp.pad(head_w, ((0, 0), (0, n_pad - (A + 1))))
    head_b = jnp.concatenate([params["pi_b"], params["v_b"]], axis=0)
    head_b = jnp.pad(head_b, (0, n_pad - (A + 1))).reshape(1, n_pad)

    return {
        "c1_w": prep_conv(params["c1_w"]), "c1_b": params["c1_b"].reshape(1, -1),
        "c2_w": prep_conv(params["c2_w"]), "c2_b": params["c2_b"].reshape(1, -1),
        "c3_w": prep_conv(params["c3_w"]), "c3_b": params["c3_b"].reshape(1, -1),
        "fc_w": fc_w, "fc_b": params["fc_b"].reshape(1, -1),
        "head_w": head_w, "head_b": head_b,
    }


# ----------------------------------------------------------------------------
# A2C forward (NCHW input, NHWC internally)
# ----------------------------------------------------------------------------
def a2c_forward(x_nchw, prep, action_size):
    x = jnp.transpose(x_nchw, (0, 2, 3, 1))           # single layout change at entry
    x = conv2d_relu_nhwc(x, prep["c1_w"], prep["c1_b"], 8, 8, 4)
    x = conv2d_relu_nhwc(x, prep["c2_w"], prep["c2_b"], 4, 4, 2)
    x = conv2d_relu_nhwc(x, prep["c3_w"], prep["c3_b"], 3, 3, 1)
    n = x.shape[0]
    x = x.reshape(n, -1)                              # NHWC flatten; fc_w pre-permuted
    out = mlp_heads(x, prep["fc_w"], prep["fc_b"], prep["head_w"], prep["head_b"])
    return out[:, :action_size], out[:, action_size:action_size + 1]


# ----------------------------------------------------------------------------
# Pure-JAX reference of the PyTorch module (for a numeric sanity check)
# ----------------------------------------------------------------------------
def a2c_reference(x, params):
    def conv(x, w, b, stride):
        y = jax.lax.conv_general_dilated(
            x, w, window_strides=(stride, stride), padding="VALID",
            dimension_numbers=("NCHW", "OIHW", "NCHW"))
        return jax.nn.relu(y + b[None, :, None, None])

    x = conv(x, params["c1_w"], params["c1_b"], 4)
    x = conv(x, params["c2_w"], params["c2_b"], 2)
    x = conv(x, params["c3_w"], params["c3_b"], 1)
    x = x.reshape(x.shape[0], -1)
    h = jax.nn.relu(x @ params["fc_w"].T + params["fc_b"])
    policy = h @ params["pi_w"].T + params["pi_b"]
    value = h @ params["v_w"].T + params["v_b"]
    return policy, value


if __name__ == "__main__":
    # Small conv-stack-consistent shapes:
    #   H=W=44: (44-8)/4+1=10 -> (10-4)/2+1=4 -> (4-3)/1+1=2  => conv_out = 64*2*2 = 256
    batch = 2
    state_size = (4, 44, 44)
    action_size = 4

    key = jax.random.PRNGKey(0)
    k_x, k_p = jax.random.split(key)
    x = jax.random.normal(k_x, (batch, *state_size), jnp.float32)
    params = init_params(k_p, state_size, action_size)
    prep = prepare_params(params, state_size, action_size)

    fwd = jax.jit(a2c_forward, static_argnums=(2,))
    policy, value = fwd(x, prep, action_size)
    jax.block_until_ready((policy, value))

    assert policy.shape == (batch, action_size), policy.shape
    assert value.shape == (batch, 1), value.shape

    # Numeric check vs plain-JAX reference (loose tol: both paths use MXU passes).
    ref_p, ref_v = a2c_reference(x, params)
    assert float(jnp.max(jnp.abs(policy - ref_p))) < 5e-2
    assert float(jnp.max(jnp.abs(value - ref_v))) < 5e-2

    print("KERNEL_OK")
</pallas_src>

<mosaic_0001>
module attributes {stable_mosaic.version = 11 : i64} {
  func.func @_matmul_bias_kernel(%arg0: i32, %arg1: memref<200x256xf32, #tpu.memory_space<vmem>>, %arg2: memref<256x32xf32, #tpu.memory_space<vmem>>, %arg3: memref<1x32xf32, #tpu.memory_space<vmem>>, %arg4: memref<200x32xf32, #tpu.memory_space<vmem>>) attributes {dimension_semantics = [#tpu.dimension_semantics<parallel>], iteration_bounds = array<i64: 1>, scalar_prefetch = 0 : i64, scratch_operands = 0 : i64, tpu.core_type = #tpu.core_type<tc>, window_params = [{transform_indices = @transform_0, window_bounds = array<i64: 200, 256>}, {pipeline_mode = #tpu.pipeline_mode<synchronous>, transform_indices = @transform_1, window_bounds = array<i64: 256, 32>}, {pipeline_mode = #tpu.pipeline_mode<synchronous>, transform_indices = @transform_2, window_bounds = array<i64: 1, 32>}, {transform_indices = @transform_3, window_bounds = array<i64: 200, 32>}]} {
    %c0 = arith.constant 0 : index
    %c0_0 = arith.constant 0 : index
    %0 = vector.load %arg1[%c0, %c0_0] : memref<200x256xf32, #tpu.memory_space<vmem>>, vector<200x256xf32>
    %c0_1 = arith.constant 0 : index
    %c0_2 = arith.constant 0 : index
    %1 = vector.load %arg2[%c0_1, %c0_2] : memref<256x32xf32, #tpu.memory_space<vmem>>, vector<256x32xf32>
    %cst = arith.constant dense<0.000000e+00> : vector<200x32xf32>
    %2 = tpu.matmul %0, %1, %cst {dimension_numbers = #tpu.dot_dimension_numbers<[1], [0], [0], [1], [0, 0, 1, 1], [], []>} : vector<200x256xf32>, vector<256x32xf32>, vector<200x32xf32> -> vector<200x32xf32>
    %c0_3 = arith.constant 0 : index
    %c0_4 = arith.constant 0 : index
    %3 = vector.load %arg3[%c0_3, %c0_4] : memref<1x32xf32, #tpu.memory_space<vmem>>, vector<1x32xf32>
    %4 = vector.broadcast %3 : vector<1x32xf32> to vector<200x32xf32>
    %5 = arith.addf %2, %4 : vector<200x32xf32>
    %cst_5 = arith.constant 0.000000e+00 : f32
    %6 = vector.broadcast %cst_5 : f32 to vector<200x32xf32>
    %7 = arith.maximumf %5, %6 : vector<200x32xf32>
    %c0_6 = arith.constant 0 : index
    %c0_7 = arith.constant 0 : index
    %8 = vector.load %arg4[%c0_6, %c0_7] : memref<200x32xf32, #tpu.memory_space<vmem>>, vector<200x32xf32>
    tpu.vector_store %arg4[%c0_6, %c0_7], %7 {strides = array<i32>} : memref<200x32xf32, #tpu.memory_space<vmem>>, vector<200x32xf32>,
    return
  }
  func.func @transform_0(%arg0: i32) -> (i32, i32) {
    %c0_i32 = arith.constant 0 : i32
    %c0_i32_0 = arith.constant 0 : i32
    return %arg0, %c0_i32 : i32, i32
  }
  func.func @transform_1(%arg0: i32) -> (i32, i32) {
    %c0_i32 = arith.constant 0 : i32
    %c0_i32_0 = arith.constant 0 : i32
    %c0_i32_1 = arith.constant 0 : i32
    return %c0_i32, %c0_i32_0 : i32, i32
  }
  func.func @transform_2(%arg0: i32) -> (i32, i32) {
    %c0_i32 = arith.constant 0 : i32
    %c0_i32_0 = arith.constant 0 : i32
    %c0_i32_1 = arith.constant 0 : i32
    return %c0_i32, %c0_i32_0 : i32, i32
  }
  func.func @transform_3(%arg0: i32) -> (i32, i32) {
    %c0_i32 = arith.constant 0 : i32
    %c0_i32_0 = arith.constant 0 : i32
    return %arg0, %c0_i32 : i32, i32
  }
}

module attributes {stable_mosaic.version = 11 : i64} {
  func.func @_matmul_bias_kernel(%arg0: i32, %arg1: memref<32x512xf32, #tpu.memory_space<vmem>>, %arg2: memref<512x64xf32, #tpu.memory_space<vmem>>, %arg3: memref<1x64xf32, #tpu.memory_space<vmem>>, %arg4: memref<32x64xf32, #tpu.memory_space<vmem>>) attributes {dimension_semantics = [#tpu.dimension_semantics<parallel>], iteration_bounds = array<i64: 1>, scalar_prefetch = 0 : i64, scratch_operands = 0 : i64, tpu.core_type = #tpu.core_type<tc>, window_params = [{transform_indices = @transform_0, window_bounds = array<i64: 32, 512>}, {pipeline_mode = #tpu.pipeline_mode<synchronous>, transform_indices = @transform_1, window_bounds = array<i64: 512, 64>}, {pipeline_mode = #tpu.pipeline_mode<synchronous>, transform_indices = @transform_2, window_bounds = array<i64: 1, 64>}, {transform_indices = @transform_3, window_bounds = array<i64: 32, 64>}]} {
    %c0 = arith.constant 0 : index
    %c0_0 = arith.constant 0 : index
    %0 = vector.load %arg1[%c0, %c0_0] : memref<32x512xf32, #tpu.memory_space<vmem>>, vector<32x512xf32>
    %c0_1 = arith.constant 0 : index
    %c0_2 = arith.constant 0 : index
    %1 = vector.load %arg2[%c0_1, %c0_2] : memref<512x64xf32, #tpu.memory_space<vmem>>, vector<512x64xf32>
    %cst = arith.constant dense<0.000000e+00> : vector<32x64xf32>
    %2 = tpu.matmul %0, %1, %cst {dimension_numbers = #tpu.dot_dimension_numbers<[1], [0], [0], [1], [0, 0, 1, 1], [], []>} : vector<32x512xf32>, vector<512x64xf32>, vector<32x64xf32> -> vector<32x64xf32>
    %c0_3 = arith.constant 0 : index
    %c0_4 = arith.constant 0 : index
    %3 = vector.load %arg3[%c0_3, %c0_4] : memref<1x64xf32, #tpu.memory_space<vmem>>, vector<1x64xf32>
    %4 = vector.broadcast %3 : vector<1x64xf32> to vector<32x64xf32>
    %5 = arith.addf %2, %4 : vector<32x64xf32>
    %cst_5 = arith.constant 0.000000e+00 : f32
    %6 = vector.broadcast %cst_5 : f32 to vector<32x64xf32>
    %7 = arith.maximumf %5, %6 : vector<32x64xf32>
    %c0_6 = arith.constant 0 : index
    %c0_7 = arith.constant 0 : index
    %8 = vector.load %arg4[%c0_6, %c0_7] : memref<32x64xf32, #tpu.memory_space<vmem>>, vector<32x64xf32>
    tpu.vector_store %arg4[%c0_6, %c0_7], %7 {strides = array<i32>} : memref<32x64xf32, #tpu.memory_space<vmem>>, vector<32x64xf32>,
    return
  }
  func.func @transform_0(%arg0: i32) -> (i32, i32) {
    %c0_i32 = arith.constant 0 : i32
    %c0_i32_0 = arith.constant 0 : i32
    return %arg0, %c0_i32 : i32, i32
  }
  func.func @transform_1(%arg0: i32) -> (i32, i32) {
    %c0_i32 = arith.constant 0 : i32
    %c0_i32_0 = arith.constant 0 : i32
    %c0_i32_1 = arith.constant 0 : i32
    return %c0_i32, %c0_i32_0 : i32, i32
  }
  func.func @transform_2(%arg0: i32) -> (i32, i32) {
    %c0_i32 = arith.constant 0 : i32
    %c0_i32_0 = arith.constant 0 : i32
    %c0_i32_1 = arith.constant 0 : i32
    return %c0_i32, %c0_i32_0 : i32, i32
  }
  func.func @transform_3(%arg0: i32) -> (i32, i32) {
    %c0_i32 = arith.constant 0 : i32
    %c0_i32_0 = arith.constant 0 : i32
    return %arg0, %c0_i32 : i32, i32
  }
}

module attributes {stable_mosaic.version = 11 : i64} {
  func.func @_matmul_bias_kernel(%arg0: i32, %arg1: memref<8x640xf32, #tpu.memory_space<vmem>>, %arg2: memref<640x64xf32, #tpu.memory_space<vmem>>, %arg3: memref<1x64xf32, #tpu.memory_space<vmem>>, %arg4: memref<8x64xf32, #tpu.memory_space<vmem>>) attributes {dimension_semantics = [#tpu.dimension_semantics<parallel>], iteration_bounds = array<i64: 1>, scalar_prefetch = 0 : i64, scratch_operands = 0 : i64, tpu.core_type = #tpu.core_type<tc>, window_params = [{transform_indices = @transform_0, window_bounds = array<i64: 8, 640>}, {pipeline_mode = #tpu.pipeline_mode<synchronous>, transform_indices = @transform_1, window_bounds = array<i64: 640, 64>}, {pipeline_mode = #tpu.pipeline_mode<synchronous>, transform_indices = @transform_2, window_bounds = array<i64: 1, 64>}, {transform_indices = @transform_3, window_bounds = array<i64: 8, 64>}]} {
    %c0 = arith.constant 0 : index
    %c0_0 = arith.constant 0 : index
    %0 = vector.load %arg1[%c0, %c0_0] : memref<8x640xf32, #tpu.memory_space<vmem>>, vector<8x640xf32>
    %c0_1 = arith.constant 0 : index
    %c0_2 = arith.constant 0 : index
    %1 = vector.load %arg2[%c0_1, %c0_2] : memref<640x64xf32, #tpu.memory_space<vmem>>, vector<640x64xf32>
    %cst = arith.constant dense<0.000000e+00> : vector<8x64xf32>
    %2 = tpu.matmul %0, %1, %cst {dimension_numbers = #tpu.dot_dimension_numbers<[1], [0], [0], [1], [0, 0, 1, 1], [], []>} : vector<8x640xf32>, vector<640x64xf32>, vector<8x64xf32> -> vector<8x64xf32>
    %c0_3 = arith.constant 0 : index
    %c0_4 = arith.constant 0 : index
    %3 = vector.load %arg3[%c0_3, %c0_4] : memref<1x64xf32, #tpu.memory_space<vmem>>, vector<1x64xf32>
    %4 = vector.broadcast %3 : vector<1x64xf32> to vector<8x64xf32>
    %5 = arith.addf %2, %4 : vector<8x64xf32>
    %cst_5 = arith.constant 0.000000e+00 : f32
    %6 = vector.broadcast %cst_5 : f32 to vector<8x64xf32>
    %7 = arith.maximumf %5, %6 : vector<8x64xf32>
    %c0_6 = arith.constant 0 : index
    %c0_7 = arith.constant 0 : index
    %8 = vector.load %arg4[%c0_6, %c0_7] : memref<8x64xf32, #tpu.memory_space<vmem>>, vector<8x64xf32>
    tpu.vector_store %arg4[%c0_6, %c0_7], %7 {strides = array<i32>} : memref<8x64xf32, #tpu.memory_space<vmem>>, vector<8x64xf32>,
    return
  }
  func.func @transform_0(%arg0: i32) -> (i32, i32) {
    %c0_i32 = arith.constant 0 : i32
    %c0_i32_0 = arith.constant 0 : i32
    return %arg0, %c0_i32 : i32, i32
  }
  func.func @transform_1(%arg0: i32) -> (i32, i32) {
    %c0_i32 = arith.constant 0 : i32
    %c0_i32_0 = arith.constant 0 : i32
    %c0_i32_1 = arith.constant 0 : i32
    return %c0_i32, %c0_i32_0 : i32, i32
  }
  func.func @transform_2(%arg0: i32) -> (i32, i32) {
    %c0_i32 = arith.constant 0 : i32
    %c0_i32_0 = arith.constant 0 : i32
    %c0_i32_1 = arith.constant 0 : i32
    return %c0_i32, %c0_i32_0 : i32, i32
  }
  func.func @transform_3(%arg0: i32) -> (i32, i32) {
    %c0_i32 = arith.constant 0 : i32
    %c0_i32_0 = arith.constant 0 : i32
    return %arg0, %c0_i32 : i32, i32
  }
}

module attributes {stable_mosaic.version = 11 : i64} {
  func.func @_mlp_heads_kernel(%arg0: i32, %arg1: memref<8x256xf32, #tpu.memory_space<vmem>>, %arg2: memref<256x512xf32, #tpu.memory_space<vmem>>, %arg3: memref<1x512xf32, #tpu.memory_space<vmem>>, %arg4: memref<512x128xf32, #tpu.memory_space<vmem>>, %arg5: memref<1x128xf32, #tpu.memory_space<vmem>>, %arg6: memref<8x128xf32, #tpu.memory_space<vmem>>) attributes {dimension_semantics = [#tpu.dimension_semantics<parallel>], iteration_bounds = array<i64: 1>, scalar_prefetch = 0 : i64, scratch_operands = 0 : i64, tpu.core_type = #tpu.core_type<tc>, window_params = [{transform_indices = @transform_0, window_bounds = array<i64: 8, 256>}, {pipeline_mode = #tpu.pipeline_mode<synchronous>, transform_indices = @transform_1, window_bounds = array<i64: 256, 512>}, {pipeline_mode = #tpu.pipeline_mode<synchronous>, transform_indices = @transform_2, window_bounds = array<i64: 1, 512>}, {pipeline_mode = #tpu.pipeline_mode<synchronous>, transform_indices = @transform_3, window_bounds = array<i64: 512, 128>}, {pipeline_mode = #tpu.pipeline_mode<synchronous>, transform_indices = @transform_4, window_bounds = array<i64: 1, 128>}, {transform_indices = @transform_5, window_bounds = array<i64: 8, 128>}]} {
    %c0 = arith.constant 0 : index
    %c0_0 = arith.constant 0 : index
    %0 = vector.load %arg1[%c0, %c0_0] : memref<8x256xf32, #tpu.memory_space<vmem>>, vector<8x256xf32>
    %c0_1 = arith.constant 0 : index
    %c0_2 = arith.constant 0 : index
    %1 = vector.load %arg2[%c0_1, %c0_2] : memref<256x512xf32, #tpu.memory_space<vmem>>, vector<256x512xf32>
    %cst = arith.constant dense<0.000000e+00> : vector<8x512xf32>
    %2 = tpu.matmul %0, %1, %cst {dimension_numbers = #tpu.dot_dimension_numbers<[1], [0], [0], [1], [0, 0, 1, 1], [], []>} : vector<8x256xf32>, vector<256x512xf32>, vector<8x512xf32> -> vector<8x512xf32>
    %c0_3 = arith.constant 0 : index
    %c0_4 = arith.constant 0 : index
    %3 = vector.load %arg3[%c0_3, %c0_4] : memref<1x512xf32, #tpu.memory_space<vmem>>, vector<1x512xf32>
    %4 = vector.broadcast %3 : vector<1x512xf32> to vector<8x512xf32>
    %5 = arith.addf %2, %4 : vector<8x512xf32>
    %cst_5 = arith.constant 0.000000e+00 : f32
    %6 = vector.broadcast %cst_5 : f32 to vector<8x512xf32>
    %7 = arith.maximumf %5, %6 : vector<8x512xf32>
    %c0_6 = arith.constant 0 : index
    %c0_7 = arith.constant 0 : index
    %8 = vector.load %arg4[%c0_6, %c0_7] : memref<512x128xf32, #tpu.memory_space<vmem>>, vector<512x128xf32>
    %cst_8 = arith.constant dense<0.000000e+00> : vector<8x128xf32>
    %9 = tpu.matmul %7, %8, %cst_8 {dimension_numbers = #tpu.dot_dimension_numbers<[1], [0], [0], [1], [0, 0, 1, 1], [], []>} : vector<8x512xf32>, vector<512x128xf32>, vector<8x128xf32> -> vector<8x128xf32>
    %c0_9 = arith.constant 0 : index
    %c0_10 = arith.constant 0 : index
    %10 = vector.load %arg5[%c0_9, %c0_10] : memref<1x128xf32, #tpu.memory_space<vmem>>, vector<1x128xf32>
    %11 = vector.broadcast %10 : vector<1x128xf32> to vector<8x128xf32>
    %12 = arith.addf %9, %11 : vector<8x128xf32>
    %c0_11 = arith.constant 0 : index
    %c0_12 = arith.constant 0 : index
    %13 = vector.load %arg6[%c0_11, %c0_12] : memref<8x128xf32, #tpu.memory_space<vmem>>, vector<8x128xf32>
    tpu.vector_store %arg6[%c0_11, %c0_12], %12 {strides = array<i32>} : memref<8x128xf32, #tpu.memory_space<vmem>>, vector<8x128xf32>,
    return
  }
  func.func @transform_0(%arg0: i32) -> (i32, i32) {
    %c0_i32 = arith.constant 0 : i32
    %c0_i32_0 = arith.constant 0 : i32
    return %arg0, %c0_i32 : i32, i32
  }
  func.func @transform_1(%arg0: i32) -> (i32, i32) {
    %c0_i32 = arith.constant 0 : i32
    %c0_i32_0 = arith.constant 0 : i32
    %c0_i32_1 = arith.constant 0 : i32
    return %c0_i32, %c0_i32_0 : i32, i32
  }
  func.func @transform_2(%arg0: i32) -> (i32, i32) {
    %c0_i32 = arith.constant 0 : i32
    %c0_i32_0 = arith.constant 0 : i32
    %c0_i32_1 = arith.constant 0 : i32
    return %c0_i32, %c0_i32_0 : i32, i32
  }
  func.func @transform_3(%arg0: i32) -> (i32, i32) {
    %c0_i32 = arith.constant 0 : i32
    %c0_i32_0 = arith.constant 0 : i32
    %c0_i32_1 = arith.constant 0 : i32
    return %c0_i32, %c0_i32_0 : i32, i32
  }
  func.func @transform_4(%arg0: i32) -> (i32, i32) {
    %c0_i32 = arith.constant 0 : i32
    %c0_i32_0 = arith.constant 0 : i32
    %c0_i32_1 = arith.constant 0 : i32
    return %c0_i32, %c0_i32_0 : i32, i32
  }
  func.func @transform_5(%arg0: i32) -> (i32, i32) {
    %c0_i32 = arith.constant 0 : i32
    %c0_i32_0 = arith.constant 0 : i32
    return %arg0, %c0_i32 : i32, i32
  }
}

</mosaic_0001>

<llo_original>
// kernel: a2c_forward.4
$region0: #{a2c_forward.4}
  #allocation0 [shape = 'u32[]', space=smem, size = 0x4, offset = 0x4, fixed_abs, tag = 'smem constant byte address 0x4 - core index']
  #allocation1 [shape = 'u32[144,128]{1,0:T(1,128)}', space=vmem, size = 0x12000, scoped, tag = 'internal scratch']
  %s0 = inlined_call_operand.hbm [shape: f32[200,256], index: 0, kind: input, shape index: {}]
  %s1 = inlined_call_operand.hbm [shape: f32[256,32], index: 1, kind: input, shape index: {}]
  %s2 = inlined_call_operand.hbm [shape: f32[1,32], index: 2, kind: input, shape index: {}]
  %s3 = inlined_call_operand.hbm [shape: f32[200,32], index: 3, kind: output, shape index: {}]
  %s4 = sld [smem:[#allocation0]]
  $region34: #{a2c_forward.4} parent=0
    _
  %s6 = ssub.s32 1, %s4
  %s7 = scalar_select 0, %s6, %s4
  $region1: #{a2c_forward.4} parent=0
    #allocation2 [shape = 'u8[204800]{0}', space=vmem, size = 0x32000, scoped, tag = 'input window, operand 0, single buffered']
    #allocation3 [shape = 's32[1]{0}', space=sflag, size = 0x4, scoped, tag = 'scoped memory for a2c_forward.4']
    #allocation4 [shape = 's32[1]{0}', space=sflag, size = 0x4, scoped, tag = 'scoped memory for a2c_forward.4']
    #allocation5 [shape = 'u8[131072]{0}', space=vmem, size = 0x20000, scoped, tag = 'input window, operand 1, single buffered']
    #allocation6 [shape = 's32[1]{0}', space=sflag, size = 0x4, scoped, tag = 'scoped memory for a2c_forward.4']
    #allocation7 [shape = 'u8[512]{0}', space=vmem, size = 0x400, scoped, tag = 'input window, operand 2, single buffered']
    #allocation8 [shape = 'u8[102400]{0}', space=vmem, size = 0x19000, scoped, tag = 'output window, operand 0, single buffered']
    %8 = vsyncpa [#allocation3], 0
    %9 = vsyncpa [#allocation6], 0
    %10 = vsyncpa [#allocation4], 0
    // Predicated region
    $region2: #{a2c_forward.4} parent=1 // pred_check
      _
    $region3: #{a2c_forward.4} parent=1 // pred_check_branch
      %12 = sbr.rel (0) target = $region5
    $region4: #{a2c_forward.4} parent=1 // pred_region
      %s14 = ssub.s32 6400, 6400
      %15 = vsyncadd [#allocation3], %s14
      %s16 = sshll.u32 [#allocation2], 4
      %s17 = int_to_ptr.vmem [resolvable:$true] %s16
      %22 = dma.hbm_to_vmem [thread:$0]  %s0, 6400, %s17, [#allocation3], 256, 256, 16
    $region5: #{a2c_forward.4} parent=1 // pred_fallthru
      _
    // Predicated region
    $region6: #{a2c_forward.4} parent=1 // pred_check
      _
    $region7: #{a2c_forward.4} parent=1 // pred_check_branch
      %24 = sbr.rel (0) target = $region9
    $region8: #{a2c_forward.4} parent=1 // pred_region
      %s26 = ssub.s32 4096, 4096
      %27 = vsyncadd [#allocation6], %s26
      %s28 = sshll.u32 [#allocation5], 4
      %s29 = int_to_ptr.vmem [resolvable:$true] %s28
      %34 = dma.hbm_to_vmem [thread:$0]  %s1, 4096, %s29, [#allocation6], 128, 128, 8
    $region9: #{a2c_forward.4} parent=1 // pred_fallthru
      _
    // Predicated region
    $region10: #{a2c_forward.4} parent=1 // pred_check
      _
    $region11: #{a2c_forward.4} parent=1 // pred_check_branch
      %36 = sbr.rel (0) target = $region13
    $region12: #{a2c_forward.4} parent=1 // pred_region
      %s38 = ssub.s32 16, 16
      %39 = vsyncadd [#allocation6], %s38
      %s41 = sshll.u32 [#allocation7], 4
      %s42 = int_to_ptr.vmem [resolvable:$true] %s41
      %44 = dma.hbm_to_vmem [thread:$0]  %s2, 16, %s42, [#allocation6]
    $region13: #{a2c_forward.4} parent=1 // pred_fallthru
      _
    // Predicated region
    $region14: #{a2c_forward.4} parent=1 // pred_check
      _
    $region15: #{a2c_forward.4} parent=1 // pred_check_branch
      %46 = sbr.rel (0) target = $region17
    $region16: #{a2c_forward.4} parent=1 // pred_region
      %47 = dma.done [#allocation3], 6400
    $region17: #{a2c_forward.4} parent=1 // pred_fallthru
      _
    // Predicated region
    $region18: #{a2c_forward.4} parent=1 // pred_check
      _
    $region19: #{a2c_forward.4} parent=1 // pred_check_branch
      %49 = sbr.rel (0) target = $region21
    $region20: #{a2c_forward.4} parent=1 // pred_region
      %50 = dma.done [#allocation6], 4096
    $region21: #{a2c_forward.4} parent=1 // pred_fallthru
      _
    // Predicated region
    $region22: #{a2c_forward.4} parent=1 // pred_check
      _
    $region23: #{a2c_forward.4} parent=1 // pred_check_branch
      %52 = sbr.rel (0) target = $region25
    $region24: #{a2c_forward.4} parent=1 // pred_region
      %53 = dma.done [#allocation6], 16
    $region25: #{a2c_forward.4} parent=1 // pred_fallthru
      _
    %v54 = vld [vmem:[#allocation2] sm:$0xff]
    %v55 = vld [vmem:[#allocation2 + $0x8] sm:$0xff]
    %v56 = vld [vmem:[#allocation2 + $0x10] sm:$0xff]
    %v57 = vld [vmem:[#allocation2 + $0x18] sm:$0xff]
    %v58 = vld [vmem:[#allocation2 + $0x20] sm:$0xff]
    %v59 = vld [vmem:[#allocation2 + $0x28] sm:$0xff]
    %v60 = vld [vmem:[#allocation2 + $0x30] sm:$0xff]
    %v61 = vld [vmem:[#allocation2 + $0x38] sm:$0xff]
    %v62 = vld [vmem:[#allocation2 + $0x40] sm:$0xff]
    %v63 = vld [vmem:[#allocation2 + $0x48] sm:$0xff]
    %v64 = vld [vmem:[#allocation2 + $0x50] sm:$0xff]
    %v65 = vld [vmem:[#allocation2 + $0x58] sm:$0xff]
    %v66 = vld [vmem:[#allocation2 + $0x60] sm:$0xff]
    %v67 = vld [vmem:[#allocation2 + $0x68] sm:$0xff]
    %v68 = vld [vmem:[#allocation2 + $0x70] sm:$0xff]
    %v69 = vld [vmem:[#allocation2 + $0x78] sm:$0xff]
    %v70 = vld [vmem:[#allocation2 + $0x80] sm:$0xff]
    %v71 = vld [vmem:[#allocation2 + $0x88] sm:$0xff]
    %v72 = vld [vmem:[#allocation2 + $0x90] sm:$0xff]
    %v73 = vld [vmem:[#allocation2 + $0x98] sm:$0xff]
    %v74 = vld [vmem:[#allocation2 + $0xa0] sm:$0xff]
    %v75 = vld [vmem:[#allocation2 + $0xa8] sm:$0xff]
    %v76 = vld [vmem:[#allocation2 + $0xb0] sm:$0xff]
    %v77 = vld [vmem:[#allocation2 + $0xb8] sm:$0xff]
    %v78 = vld [vmem:[#allocation2 + $0xc0] sm:$0xff]
    %v79 = vld [vmem:[#allocation2 + $0xc8] sm:$0xff]
    %v80 = vld [vmem:[#allocation2 + $0xd0] sm:$0xff]
    %v81 = vld [vmem:[#allocation2 + $0xd8] sm:$0xff]
    %v82 = vld [vmem:[#allocation2 + $0xe0] sm:$0xff]
    %v83 = vld [vmem:[#allocation2 + $0xe8] sm:$0xff]
    %v84 = vld [vmem:[#allocation2 + $0xf0] sm:$0xff]
    %v85 = vld [vmem:[#allocation2 + $0xf8] sm:$0xff]
    %v86 = vld [vmem:[#allocation2 + $0x100] sm:$0xff]
    %v87 = vld [vmem:[#allocation2 + $0x108] sm:$0xff]
    %v88 = vld [vmem:[#allocation2 + $0x110] sm:$0xff]
    %v89 = vld [vmem:[#allocation2 + $0x118] sm:$0xff]
    %v90 = vld [vmem:[#allocation2 + $0x120] sm:$0xff]
    %v91 = vld [vmem:[#allocation2 + $0x128] sm:$0xff]
    %v92 = vld [vmem:[#allocation2 + $0x130] sm:$0xff]
    %v93 = vld [vmem:[#allocation2 + $0x138] sm:$0xff]
    %v94 = vld [vmem:[#allocation2 + $0x140] sm:$0xff]
    %v95 = vld [vmem:[#allocation2 + $0x148] sm:$0xff]
    %v96 = vld [vmem:[#allocation2 + $0x150] sm:$0xff]
    %v97 = vld [vmem:[#allocation2 + $0x158] sm:$0xff]
    %v98 = vld [vmem:[#allocation2 + $0x160] sm:$0xff]
    %v99 = vld [vmem:[#allocation2 + $0x168] sm:$0xff]
    %v100 = vld [vmem:[#allocation2 + $0x170] sm:$0xff]
    %v101 = vld [vmem:[#allocation2 + $0x178] sm:$0xff]
    %v102 = vld [vmem:[#allocation2 + $0x180] sm:$0xff]
    %v103 = vld [vmem:[#allocation2 + $0x188] sm:$0xff]
    %v104 = vld [vmem:[#allocation5] sm:$0xff]
    %v105 = vld [vmem:[#allocation5 + $0x8] sm:$0xff]
    %v106 = vld [vmem:[#allocation5 + $0x10] sm:$0xff]
    %v107 = vld [vmem:[#allocation5 + $0x18] sm:$0xff]
    %v108 = vld [vmem:[#allocation5 + $0x20] sm:$0xff]
    %v109 = vld [vmem:[#allocation5 + $0x28] sm:$0xff]
    %v110 = vld [vmem:[#allocation5 + $0x30] sm:$0xff]
    %v111 = vld [vmem:[#allocation5 + $0x38] sm:$0xff]
    %v112 = vld [vmem:[#allocation5 + $0x40] sm:$0xff]
    %v113 = vld [vmem:[#allocation5 + $0x48] sm:$0xff]
    %v114 = vld [vmem:[#allocation5 + $0x50] sm:$0xff]
    %v115 = vld [vmem:[#allocation5 + $0x58] sm:$0xff]
    %v116 = vld [vmem:[#allocation5 + $0x60] sm:$0xff]
    %v117 = vld [vmem:[#allocation5 + $0x68] sm:$0xff]
    %v118 = vld [vmem:[#allocation5 + $0x70] sm:$0xff]
    %v119 = vld [vmem:[#allocation5 + $0x78] sm:$0xff]
    %v120 = vld [vmem:[#allocation5 + $0x80] sm:$0xff]
    %v121 = vld [vmem:[#allocation5 + $0x88] sm:$0xff]
    %v122 = vld [vmem:[#allocation5 + $0x90] sm:$0xff]
    %v123 = vld [vmem:[#allocation5 + $0x98] sm:$0xff]
    %v124 = vld [vmem:[#allocation5 + $0xa0] sm:$0xff]
    %v125 = vld [vmem:[#allocation5 + $0xa8] sm:$0xff]
    %v126 = vld [vmem:[#allocation5 + $0xb0] sm:$0xff]
    %v127 = vld [vmem:[#allocation5 + $0xb8] sm:$0xff]
    %v128 = vld [vmem:[#allocation5 + $0xc0] sm:$0xff]
    %v129 = vld [vmem:[#allocation5 + $0xc8] sm:$0xff]
    %v130 = vld [vmem:[#allocation5 + $0xd0] sm:$0xff]
    %v131 = vld [vmem:[#allocation5 + $0xd8] sm:$0xff]
    %v132 = vld [vmem:[#allocation5 + $0xe0] sm:$0xff]
    %v133 = vld [vmem:[#allocation5 + $0xe8] sm:$0xff]
    %v134 = vld [vmem:[#allocation5 + $0xf0] sm:$0xff]
    %v135 = vld [vmem:[#allocation5 + $0xf8] sm:$0xff]
    %v136 = vld [vmem:[#allocation7] sm:$0x1]
    %v138 = vlaneseq
    %v139 = vshrl.u32 %v138, 7
    %v140 = vsub.s32 0, %v139
    %v141 = vrot.slane %v136, %v140
    %143 = vmatprep.subr.mxu0 0.0
    %144 = vmatpush1.msra.mxu0 %v104
    %145 = vmatprep.subr.mxu0 0.0
    %146 = vmatpush1.msra.mxu0 %v105
    %147 = vmatprep.subr.mxu0 0.0
    %148 = vmatpush1.msra.mxu0 %v106
    %149 = vmatprep.subr.mxu0 0.0
    %150 = vmatpush1.msra.mxu0 %v107
    %151 = vmatprep.subr.mxu0 0.0
    %152 = vmatpush1.msra.mxu0 %v108
    %153 = vmatprep.subr.mxu0 0.0
    %154 = vmatpush1.msra.mxu0 %v109
    %155 = vmatprep.subr.mxu0 0.0
    %156 = vmatpush1.msra.mxu0 %v110
    %157 = vmatprep.subr.mxu0 0.0
    %158 = vmatpush1.msra.mxu0 %v111
    %159 = vmatprep.subr.mxu0 0.0
    %160 = vmatpush1.msra.mxu0 %v112
    %161 = vmatprep.subr.mxu0 0.0
    %162 = vmatpush1.msra.mxu0 %v113
    %163 = vmatprep.subr.mxu0 0.0
    %164 = vmatpush1.msra.mxu0 %v114
    %165 = vmatprep.subr.mxu0 0.0
    %166 = vmatpush1.msra.mxu0 %v115
    %167 = vmatprep.subr.mxu0 0.0
    %168 = vmatpush1.msra.mxu0 %v116
    %169 = vmatprep.subr.mxu0 0.0
    %170 = vmatpush1.msra.mxu0 %v117
    %171 = vmatprep.subr.mxu0 0.0
    %172 = vmatpush1.msra.mxu0 %v118
    %173 = vmatprep.subr.mxu0 0.0
    %174 = vmatpush1.msra.mxu0 %v119
    %175 = vmatprep.subr.mxu0 0.0
    %176 = vmatpush1.msra.mxu0 %v120
    %177 = vmatprep.subr.mxu0 0.0
    %178 = vmatpush1.msra.mxu0 %v121
    %179 = vmatprep.subr.mxu0 0.0
    %180 = vmatpush1.msra.mxu0 %v122
    %181 = vmatprep.subr.mxu0 0.0
    %182 = vmatpush1.msra.mxu0 %v123
    %183 = vmatprep.subr.mxu0 0.0
    %184 = vmatpush1.msra.mxu0 %v124
    %185 = vmatprep.subr.mxu0 0.0
    %186 = vmatpush1.msra.mxu0 %v125
    %187 = vmatprep.subr.mxu0 0.0
    %188 = vmatpush1.msra.mxu0 %v126
    %189 = vmatprep.subr.mxu0 0.0
    %190 = vmatpush1.msra.mxu0 %v127
    %191 = vmatprep.subr.mxu0 0.0
    %192 = vmatpush1.msra.mxu0 %v128
    %193 = vmatprep.subr.mxu0 0.0
    %194 = vmatpush1.msra.mxu0 %v129
    %195 = vmatprep.subr.mxu0 0.0
    %196 = vmatpush1.msra.mxu0 %v130
    %197 = vmatprep.subr.mxu0 0.0
    %198 = vmatpush1.msra.mxu0 %v131
    %199 = vmatprep.subr.mxu0 0.0
    %200 = vmatpush1.msra.mxu0 %v132
    %201 = vmatprep.subr.mxu0 0.0
    %202 = vmatpush1.msra.mxu0 %v133
    %203 = vmatprep.subr.mxu0 0.0
    %204 = vmatpush1.msra.mxu0 %v134
    %205 = vmatprep.subr.mxu0 0.0
    %206 = vmatpush1.msra.mxu0 %v135
    %207 = vmatprep.mubr.f32.mxu0 %v55
    %208 = vmatmul.mubr.f32.gmra.mrb[0].mxu0 %v54
    %v209 = vpop.f32.mrb[0].mxu0
    %v210 = vadd.f32 %v141, %v209
    %v211 = vpop.f32.mrb[0].mxu0
    %212 = vmatprep.mubr.f32.mxu0 %v57
    %213 = vmatmul.mubr.f32.gmra.mrb[0].mxu0 %v56
    %v214 = vpop.f32.mrb[0].mxu0
    %v215 = vadd.f32 %v141, %v214
    %v216 = vpop.f32.mrb[0].mxu0
    %217 = vmatprep.mubr.f32.mxu0 %v59
    %218 = vmatmul.mubr.f32.gmra.mrb[0].mxu0 %v58
    %v219 = vpop.f32.mrb[0].mxu0
    %v220 = vadd.f32 %v141, %v219
    %v221 = vpop.f32.mrb[0].mxu0
    %222 = vmatprep.mubr.f32.mxu0 %v61
    %223 = vmatmul.mubr.f32.gmra.mrb[0].mxu0 %v60
    %v224 = vpop.f32.mrb[0].mxu0
    %v225 = vadd.f32 %v141, %v224
    %v226 = vpop.f32.mrb[0].mxu0
    %227 = vmatprep.mubr.f32.mxu0 %v63
    %228 = vmatmul.mubr.f32.gmra.mrb[0].mxu0 %v62
    %v229 = vpop.f32.mrb[0].mxu0
    %v230 = vadd.f32 %v141, %v229
    %v231 = vpop.f32.mrb[0].mxu0
    %232 = vmatprep.mubr.f32.mxu0 %v65
    %233 = vmatmul.mubr.f32.gmra.mrb[0].mxu0 %v64
    %v234 = vpop.f32.mrb[0].mxu0
    %v235 = vadd.f32 %v141, %v234
    %v236 = vpop.f32.mrb[0].mxu0
    %237 = vmatprep.mubr.f32.mxu0 %v67
    %238 = vmatmul.mubr.f32.gmra.mrb[0].mxu0 %v66
    %v239 = vpop.f32.mrb[0].mxu0
    %v240 = vadd.f32 %v141, %v239
    %v241 = vpop.f32.mrb[0].mxu0
    %242 = vmatprep.mubr.f32.mxu0 %v69
    %243 = vmatmul.mubr.f32.gmra.mrb[0].mxu0 %v68
    %v244 = vpop.f32.mrb[0].mxu0
    %v245 = vadd.f32 %v141, %v244
    %v246 = vpop.f32.mrb[0].mxu0
    %247 = vmatprep.mubr.f32.mxu0 %v71
    %248 = vmatmul.mubr.f32.gmra.mrb[0].mxu0 %v70
    %v249 = vpop.f32.mrb[0].mxu0
    %v250 = vadd.f32 %v141, %v249
    %v251 = vpop.f32.mrb[0].mxu0
    %252 = vmatprep.mubr.f32.mxu0 %v73
    %253 = vmatmul.mubr.f32.gmra.mrb[0].mxu0 %v72
    %v254 = vpop.f32.mrb[0].mxu0
    %v255 = vadd.f32 %v141, %v254
    %v256 = vpop.f32.mrb[0].mxu0
    %257 = vmatprep.mubr.f32.mxu0 %v75
    %258 = vmatmul.mubr.f32.gmra.mrb[0].mxu0 %v74
    %v259 = vpop.f32.mrb[0].mxu0
    %v260 = vadd.f32 %v141, %v259
    %v261 = vpop.f32.mrb[0].mxu0
    %262 = vmatprep.mubr.f32.mxu0 %v77
    %263 = vmatmul.mubr.f32.gmra.mrb[0].mxu0 %v76
    %v264 = vpop.f32.mrb[0].mxu0
    %v265 = vadd.f32 %v141, %v264
    %v266 = vpop.f32.mrb[0].mxu0
    %267 = vmatprep.mubr.f32.mxu0 %v79
    %268 = vmatmul.mubr.f32.gmra.mrb[0].mxu0 %v78
    %v269 = vpop.f32.mrb[0].mxu0
    %v270 = vadd.f32 %v141, %v269
    %v271 = vpop.f32.mrb[0].mxu0
    %272 = vmatprep.mubr.f32.mxu0 %v81
    %273 = vmatmul.mubr.f32.gmra.mrb[0].mxu0 %v80
    %v274 = vpop.f32.mrb[0].mxu0
    %v275 = vadd.f32 %v141, %v274
    %v276 = vpop.f32.mrb[0].mxu0
    %277 = vmatprep.mubr.f32.mxu0 %v83
    %278 = vmatmul.mubr.f32.gmra.mrb[0].mxu0 %v82
    %v279 = vpop.f32.mrb[0].mxu0
    %v280 = vadd.f32 %v141, %v279
    %v281 = vpop.f32.mrb[0].mxu0
    %282 = vmatprep.mubr.f32.mxu0 %v85
    %283 = vmatmul.mubr.f32.gmra.mrb[0].mxu0 %v84
    %v284 = vpop.f32.mrb[0].mxu0
    %v285 = vadd.f32 %v141, %v284
    %v286 = vpop.f32.mrb[0].mxu0
    %287 = vmatprep.mubr.f32.mxu0 %v87
    %288 = vmatmul.mubr.f32.gmra.mrb[0].mxu0 %v86
    %v289 = vpop.f32.mrb[0].mxu0
    %v290 = vadd.f32 %v141, %v289
    %v291 = vpop.f32.mrb[0].mxu0
    %292 = vmatprep.mubr.f32.mxu0 %v89
    %293 = vmatmul.mubr.f32.gmra.mrb[0].mxu0 %v88
    %v294 = vpop.f32.mrb[0].mxu0
    %v295 = vadd.f32 %v141, %v294
    %v296 = vpop.f32.mrb[0].mxu0
    %297 = vmatprep.mubr.f32.mxu0 %v91
    %298 = vmatmul.mubr.f32.gmra.mrb[0].mxu0 %v90
    %v299 = vpop.f32.mrb[0].mxu0
    %v300 = vadd.f32 %v141, %v299
    %v301 = vpop.f32.mrb[0].mxu0
    %302 = vmatprep.mubr.f32.mxu0 %v93
    %303 = vmatmul.mubr.f32.gmra.mrb[0].mxu0 %v92
    %v304 = vpop.f32.mrb[0].mxu0
    %v305 = vadd.f32 %v141, %v304
    %v306 = vpop.f32.mrb[0].mxu0
    %307 = vmatprep.mubr.f32.mxu0 %v95
    %308 = vmatmul.mubr.f32.gmra.mrb[0].mxu0 %v94
    %v309 = vpop.f32.mrb[0].mxu0
    %v310 = vadd.f32 %v141, %v309
    %v311 = vpop.f32.mrb[0].mxu0
    %312 = vmatprep.mubr.f32.mxu0 %v97
    %313 = vmatmul.mubr.f32.gmra.mrb[0].mxu0 %v96
    %v314 = vpop.f32.mrb[0].mxu0
    %v315 = vadd.f32 %v141, %v314
    %v316 = vpop.f32.mrb[0].mxu0
    %317 = vmatprep.mubr.f32.mxu0 %v99
    %318 = vmatmul.mubr.f32.gmra.mrb[0].mxu0 %v98
    %v319 = vpop.f32.mrb[0].mxu0
    %v320 = vadd.f32 %v141, %v319
    %v321 = vpop.f32.mrb[0].mxu0
    %322 = vmatprep.mubr.f32.mxu0 %v101
    %323 = vmatmul.mubr.f32.gmra.mrb[0].mxu0 %v100
    %v324 = vpop.f32.mrb[0].mxu0
    %v325 = vadd.f32 %v141, %v324
    %v326 = vpop.f32.mrb[0].mxu0
    %327 = vmatprep.mubr.f32.mxu0 %v103
    %328 = vmatmul.mubr.f32.gmra.mrb[0].mxu0 %v102
    %v329 = vpop.f32.mrb[0].mxu0
    %v330 = vadd.f32 %v141, %v329
    %v331 = vpop.f32.mrb[0].mxu0
    %332 = vdwg.mxu0
    %v333 = vmax.f32 %v210, 0.0
    %v334 = vmax.f32 %v215, 0.0
    %v335 = vmax.f32 %v220, 0.0
    %v336 = vmax.f32 %v225, 0.0
    %v337 = vmax.f32 %v230, 0.0
    %v338 = vmax.f32 %v235, 0.0
    %v339 = vmax.f32 %v240, 0.0
    %v340 = vmax.f32 %v245, 0.0
    %v341 = vmax.f32 %v250, 0.0
    %v342 = vmax.f32 %v255, 0.0
    %v343 = vmax.f32 %v260, 0.0
    %v344 = vmax.f32 %v265, 0.0
    %v345 = vmax.f32 %v270, 0.0
    %v346 = vmax.f32 %v275, 0.0
    %v347 = vmax.f32 %v280, 0.0
    %v348 = vmax.f32 %v285, 0.0
    %v349 = vmax.f32 %v290, 0.0
    %v350 = vmax.f32 %v295, 0.0
    %v351 = vmax.f32 %v300, 0.0
    %v352 = vmax.f32 %v305, 0.0
    %v353 = vmax.f32 %v310, 0.0
    %v354 = vmax.f32 %v315, 0.0
    %v355 = vmax.f32 %v320, 0.0
    %v356 = vmax.f32 %v325, 0.0
    %v357 = vmax.f32 %v330, 0.0
    %vm358 = vcmask 261120
    %359 = vst.msk [vmem:[#allocation8] sm:$0xff] %vm358, %v333
    %360 = vst.msk [vmem:[#allocation8 + $0x8] sm:$0xff] %vm358, %v334
    %361 = vst.msk [vmem:[#allocation8 + $0x10] sm:$0xff] %vm358, %v335
    %362 = vst.msk [vmem:[#allocation8 + $0x18] sm:$0xff] %vm358, %v336
    %363 = vst.msk [vmem:[#allocation8 + $0x20] sm:$0xff] %vm358, %v337
    %364 = vst.msk [vmem:[#allocation8 + $0x28] sm:$0xff] %vm358, %v338
    %365 = vst.msk [vmem:[#allocation8 + $0x30] sm:$0xff] %vm358, %v339
    %366 = vst.msk [vmem:[#allocation8 + $0x38] sm:$0xff] %vm358, %v340
    %367 = vst.msk [vmem:[#allocation8 + $0x40] sm:$0xff] %vm358, %v341
    %368 = vst.msk [vmem:[#allocation8 + $0x48] sm:$0xff] %vm358, %v342
    %369 = vst.msk [vmem:[#allocation8 + $0x50] sm:$0xff] %vm358, %v343
    %370 = vst.msk [vmem:[#allocation8 + $0x58] sm:$0xff] %vm358, %v344
    %371 = vst.msk [vmem:[#allocation8 + $0x60] sm:$0xff] %vm358, %v345
    %372 = vst.msk [vmem:[#allocation8 + $0x68] sm:$0xff] %vm358, %v346
    %373 = vst.msk [vmem:[#allocation8 + $0x70] sm:$0xff] %vm358, %v347
    %374 = vst.msk [vmem:[#allocation8 + $0x78] sm:$0xff] %vm358, %v348
    %375 = vst.msk [vmem:[#allocation8 + $0x80] sm:$0xff] %vm358, %v349
    %376 = vst.msk [vmem:[#allocation8 + $0x88] sm:$0xff] %vm358, %v350
    %377 = vst.msk [vmem:[#allocation8 + $0x90] sm:$0xff] %vm358, %v351
    %378 = vst.msk [vmem:[#allocation8 + $0x98] sm:$0xff] %vm358, %v352
    %379 = vst.msk [vmem:[#allocation8 + $0xa0] sm:$0xff] %vm358, %v353
    %380 = vst.msk [vmem:[#allocation8 + $0xa8] sm:$0xff] %vm358, %v354
    %381 = vst.msk [vmem:[#allocation8 + $0xb0] sm:$0xff] %vm358, %v355
    %382 = vst.msk [vmem:[#allocation8 + $0xb8] sm:$0xff] %vm358, %v356
    %383 = vst.msk [vmem:[#allocation8 + $0xc0] sm:$0xff] %vm358, %v357
    // Predicated region
    $region26: #{a2c_forward.4} parent=1 // pred_check
      _
    $region27: #{a2c_forward.4} parent=1 // pred_check_branch
      %385 = sbr.rel (0) target = $region29
    $region28: #{a2c_forward.4} parent=1 // pred_region
      %s387 = ssub.s32 3200, 3200
      %388 = vsyncadd [#allocation4], %s387
      %s389 = sshll.u32 [#allocation8], 4
      %s390 = int_to_ptr.vmem [resolvable:$true] %s389
      %395 = dma.vmem_to_hbm [thread:$0]  %s390, 3200, %s3, [#allocation4], 128, 128, 8
    $region29: #{a2c_forward.4} parent=1 // pred_fallthru
      _
    // Predicated region
    $region30: #{a2c_forward.4} parent=1 // pred_check
      _
    $region31: #{a2c_forward.4} parent=1 // pred_check_branch
      %397 = sbr.rel (0) target = $region33
    $region32: #{a2c_forward.4} parent=1 // pred_region
      %398 = dma.done [#allocation4], 3200
    $region33: #{a2c_forward.4} parent=1 // pred_fallthru
      _
    %399 = vsyncpa [#allocation3], 1
    %400 = vsyncpa [#allocation6], 1
    %401 = vsyncpa [#allocation4], 1

// kernel: a2c_forward.5
$region0: #{a2c_forward.5}
  #allocation0 [shape = 'u32[]', space=smem, size = 0x4, offset = 0x4, fixed_abs, tag = 'smem constant byte address 0x4 - core index']
  #allocation1 [shape = 'u32[144,128]{1,0:T(1,128)}', space=vmem, size = 0x12000, scoped, tag = 'internal scratch']
  %s0 = inlined_call_operand.hbm [shape: f32[32,512], index: 0, kind: input, shape index: {}]
  %s1 = inlined_call_operand.hbm [shape: f32[512,64], index: 1, kind: input, shape index: {}]
  %s2 = inlined_call_operand.hbm [shape: f32[1,64], index: 2, kind: input, shape index: {}]
  %s3 = inlined_call_operand.hbm [shape: f32[32,64], index: 3, kind: output, shape index: {}]
  %s4 = sld [smem:[#allocation0]]
  $region34: #{a2c_forward.5} parent=0
    _
  %s6 = ssub.s32 1, %s4
  %s7 = scalar_select 0, %s6, %s4
  $region1: #{a2c_forward.5} parent=0
    #allocation2 [shape = 'u8[65536]{0}', space=vmem, size = 0x10000, scoped, tag = 'input window, operand 0, single buffered']
    #allocation3 [shape = 's32[1]{0}', space=sflag, size = 0x4, scoped, tag = 'scoped memory for a2c_forward.5']
    #allocation4 [shape = 's32[1]{0}', space=sflag, size = 0x4, scoped, tag = 'scoped memory for a2c_forward.5']
    #allocation5 [shape = 'u8[262144]{0}', space=vmem, size = 0x40000, scoped, tag = 'input window, operand 1, single buffered']
    #allocation6 [shape = 's32[1]{0}', space=sflag, size = 0x4, scoped, tag = 'scoped memory for a2c_forward.5']
    #allocation7 [shape = 'u8[512]{0}', space=vmem, size = 0x400, scoped, tag = 'input window, operand 2, single buffered']
    #allocation8 [shape = 'u8[16384]{0}', space=vmem, size = 0x4000, scoped, tag = 'output window, operand 0, single buffered']
    %8 = vsyncpa [#allocation3], 0
    %9 = vsyncpa [#allocation6], 0
    %10 = vsyncpa [#allocation4], 0
    // Predicated region
    $region2: #{a2c_forward.5} parent=1 // pred_check
      _
    $region3: #{a2c_forward.5} parent=1 // pred_check_branch
      %12 = sbr.rel (0) target = $region5
    $region4: #{a2c_forward.5} parent=1 // pred_region
      %s14 = ssub.s32 2048, 2048
      %15 = vsyncadd [#allocation3], %s14
      %s16 = sshll.u32 [#allocation2], 4
      %s17 = int_to_ptr.vmem [resolvable:$true] %s16
      %22 = dma.hbm_to_vmem [thread:$0]  %s0, 2048, %s17, [#allocation3], 512, 512, 32
    $region5: #{a2c_forward.5} parent=1 // pred_fallthru
      _
    // Predicated region
    $region6: #{a2c_forward.5} parent=1 // pred_check
      _
    $region7: #{a2c_forward.5} parent=1 // pred_check_branch
      %24 = sbr.rel (0) target = $region9
    $region8: #{a2c_forward.5} parent=1 // pred_region
      %s26 = ssub.s32 8192, 8192
      %27 = vsyncadd [#allocation6], %s26
      %s28 = sshll.u32 [#allocation5], 4
      %s29 = int_to_ptr.vmem [resolvable:$true] %s28
      %34 = dma.hbm_to_vmem [thread:$0]  %s1, 8192, %s29, [#allocation6], 128, 128, 8
    $region9: #{a2c_forward.5} parent=1 // pred_fallthru
      _
    // Predicated region
    $region10: #{a2c_forward.5} parent=1 // pred_check
      _
    $region11: #{a2c_forward.5} parent=1 // pred_check_branch
      %36 = sbr.rel (0) target = $region13
    $region12: #{a2c_forward.5} parent=1 // pred_region
      %s38 = ssub.s32 16, 16
      %39 = vsyncadd [#allocation6], %s38
      %s41 = sshll.u32 [#allocation7], 4
      %s42 = int_to_ptr.vmem [resolvable:$true] %s41
      %44 = dma.hbm_to_vmem [thread:$0]  %s2, 16, %s42, [#allocation6]
    $region13: #{a2c_forward.5} parent=1 // pred_fallthru
      _
    // Predicated region
    $region14: #{a2c_forward.5} parent=1 // pred_check
      _
    $region15: #{a2c_forward.5} parent=1 // pred_check_branch
      %46 = sbr.rel (0) target = $region17
    $region16: #{a2c_forward.5} parent=1 // pred_region
      %47 = dma.done [#allocation3], 2048
    $region17: #{a2c_forward.5} parent=1 // pred_fallthru
      _
    // Predicated region
    $region18: #{a2c_forward.5} parent=1 // pred_check
      _
    $region19: #{a2c_forward.5} parent=1 // pred_check_branch
      %49 = sbr.rel (0) target = $region21
    $region20: #{a2c_forward.5} parent=1 // pred_region
      %50 = dma.done [#allocation6], 8192
    $region21: #{a2c_forward.5} parent=1 // pred_fallthru
      _
    // Predicated region
    $region22: #{a2c_forward.5} parent=1 // pred_check
      _
    $region23: #{a2c_forward.5} parent=1 // pred_check_branch
      %52 = sbr.rel (0) target = $region25
    $region24: #{a2c_forward.5} parent=1 // pred_region
      %53 = dma.done [#allocation6], 16
    $region25: #{a2c_forward.5} parent=1 // pred_fallthru
      _
    %v54 = vld [vmem:[#allocation2] sm:$0xff]
    %v55 = vld [vmem:[#allocation2 + $0x8] sm:$0xff]
    %v56 = vld [vmem:[#allocation2 + $0x10] sm:$0xff]
    %v57 = vld [vmem:[#allocation2 + $0x18] sm:$0xff]
    %v58 = vld [vmem:[#allocation2 + $0x20] sm:$0xff]
    %v59 = vld [vmem:[#allocation2 + $0x28] sm:$0xff]
    %v60 = vld [vmem:[#allocation2 + $0x30] sm:$0xff]
    %v61 = vld [vmem:[#allocation2 + $0x38] sm:$0xff]
    %v62 = vld [vmem:[#allocation2 + $0x40] sm:$0xff]
    %v63 = vld [vmem:[#allocation2 + $0x48] sm:$0xff]
    %v64 = vld [vmem:[#allocation2 + $0x50] sm:$0xff]
    %v65 = vld [vmem:[#allocation2 + $0x58] sm:$0xff]
    %v66 = vld [vmem:[#allocation2 + $0x60] sm:$0xff]
    %v67 = vld [vmem:[#allocation2 + $0x68] sm:$0xff]
    %v68 = vld [vmem:[#allocation2 + $0x70] sm:$0xff]
    %v69 = vld [vmem:[#allocation2 + $0x78] sm:$0xff]
    %v70 = vld [vmem:[#allocation5] sm:$0xff]
    %v71 = vld [vmem:[#allocation5 + $0x8] sm:$0xff]
    %v72 = vld [vmem:[#allocation5 + $0x10] sm:$0xff]
    %v73 = vld [vmem:[#allocation5 + $0x18] sm:$0xff]
    %v74 = vld [vmem:[#allocation5 + $0x20] sm:$0xff]
    %v75 = vld [vmem:[#allocation5 + $0x28] sm:$0xff]
    %v76 = vld [vmem:[#allocation5 + $0x30] sm:$0xff]
    %v77 = vld [vmem:[#allocation5 + $0x38] sm:$0xff]
    %v78 = vld [vmem:[#allocation5 + $0x40] sm:$0xff]
    %v79 = vld [vmem:[#allocation5 + $0x48] sm:$0xff]
    %v80 = vld [vmem:[#allocation5 + $0x50] sm:$0xff]
    %v81 = vld [vmem:[#allocation5 + $0x58] sm:$0xff]
    %v82 = vld [vmem:[#allocation5 + $0x60] sm:$0xff]
    %v83 = vld [vmem:[#allocation5 + $0x68] sm:$0xff]
    %v84 = vld [vmem:[#allocation5 + $0x70] sm:$0xff]
    %v85 = vld [vmem:[#allocation5 + $0x78] sm:$0xff]
    %v86 = vld [vmem:[#allocation5 + $0x80] sm:$0xff]
    %v87 = vld [vmem:[#allocation5 + $0x88] sm:$0xff]
    %v88 = vld [vmem:[#allocation5 + $0x90] sm:$0xff]
    %v89 = vld [vmem:[#allocation5 + $0x98] sm:$0xff]
    %v90 = vld [vmem:[#allocation5 + $0xa0] sm:$0xff]
    %v91 = vld [vmem:[#allocation5 + $0xa8] sm:$0xff]
    %v92 = vld [vmem:[#allocation5 + $0xb0] sm:$0xff]
    %v93 = vld [vmem:[#allocation5 + $0xb8] sm:$0xff]
    %v94 = vld [vmem:[#allocation5 + $0xc0] sm:$0xff]
    %v95 = vld [vmem:[#allocation5 + $0xc8] sm:$0xff]
    %v96 = vld [vmem:[#allocation5 + $0xd0] sm:$0xff]
    %v97 = vld [vmem:[#allocation5 + $0xd8] sm:$0xff]
    %v98 = vld [vmem:[#allocation5 + $0xe0] sm:$0xff]
    %v99 = vld [vmem:[#allocation5 + $0xe8] sm:$0xff]
    %v100 = vld [vmem:[#allocation5 + $0xf0] sm:$0xff]
    %v101 = vld [vmem:[#allocation5 + $0xf8] sm:$0xff]
    %v102 = vld [vmem:[#allocation5 + $0x100] sm:$0xff]
    %v103 = vld [vmem:[#allocation5 + $0x108] sm:$0xff]
    %v104 = vld [vmem:[#allocation5 + $0x110] sm:$0xff]
    %v105 = vld [vmem:[#allocation5 + $0x118] sm:$0xff]
    %v106 = vld [vmem:[#allocation5 + $0x120] sm:$0xff]
    %v107 = vld [vmem:[#allocation5 + $0x128] sm:$0xff]
    %v108 = vld [vmem:[#allocation5 + $0x130] sm:$0xff]
    %v109 = vld [vmem:[#allocation5 + $0x138] sm:$0xff]
    %v110 = vld [vmem:[#allocation5 + $0x140] sm:$0xff]
    %v111 = vld [vmem:[#allocation5 + $0x148] sm:$0xff]
    %v112 = vld [vmem:[#allocation5 + $0x150] sm:$0xff]
    %v113 = vld [vmem:[#allocation5 + $0x158] sm:$0xff]
    %v114 = vld [vmem:[#allocation5 + $0x160] sm:$0xff]
    %v115 = vld [vmem:[#allocation5 + $0x168] sm:$0xff]
    %v116 = vld [vmem:[#allocation5 + $0x170] sm:$0xff]
    %v117 = vld [vmem:[#allocation5 + $0x178] sm:$0xff]
    %v118 = vld [vmem:[#allocation5 + $0x180] sm:$0xff]
    %v119 = vld [vmem:[#allocation5 + $0x188] sm:$0xff]
    %v120 = vld [vmem:[#allocation5 + $0x190] sm:$0xff]
    %v121 = vld [vmem:[#allocation5 + $0x198] sm:$0xff]
    %v122 = vld [vmem:[#allocation5 + $0x1a0] sm:$0xff]
    %v123 = vld [vmem:[#allocation5 + $0x1a8] sm:$0xff]
    %v124 = vld [vmem:[#allocation5 + $0x1b0] sm:$0xff]
    %v125 = vld [vmem:[#allocation5 + $0x1b8] sm:$0xff]
    %v126 = vld [vmem:[#allocation5 + $0x1c0] sm:$0xff]
    %v127 = vld [vmem:[#allocation5 + $0x1c8] sm:$0xff]
    %v128 = vld [vmem:[#allocation5 + $0x1d0] sm:$0xff]
    %v129 = vld [vmem:[#allocation5 + $0x1d8] sm:$0xff]
    %v130 = vld [vmem:[#allocation5 + $0x1e0] sm:$0xff]
    %v131 = vld [vmem:[#allocation5 + $0x1e8] sm:$0xff]
    %v132 = vld [vmem:[#allocation5 + $0x1f0] sm:$0xff]
    %v133 = vld [vmem:[#allocation5 + $0x1f8] sm:$0xff]
    %v134 = vld [vmem:[#allocation7] sm:$0x1]
    %v136 = vlaneseq
    %v137 = vshrl.u32 %v136, 7
    %v138 = vsub.s32 0, %v137
    %v139 = vrot.slane %v134, %v138
    %141 = vmatprep.subr.mxu0 0.0
    %142 = vmatpush1.msra.mxu0 %v70
    %143 = vmatprep.subr.mxu0 0.0
    %144 = vmatpush1.msra.mxu0 %v71
    %145 = vmatprep.subr.mxu0 0.0
    %146 = vmatpush1.msra.mxu0 %v72
    %147 = vmatprep.subr.mxu0 0.0
    %148 = vmatpush1.msra.mxu0 %v73
    %149 = vmatprep.subr.mxu0 0.0
    %150 = vmatpush1.msra.mxu0 %v74
    %151 = vmatprep.subr.mxu0 0.0
    %152 = vmatpush1.msra.mxu0 %v75
    %153 = vmatprep.subr.mxu0 0.0
    %154 = vmatpush1.msra.mxu0 %v76
    %155 = vmatprep.subr.mxu0 0.0
    %156 = vmatpush1.msra.mxu0 %v77
    %157 = vmatprep.subr.mxu0 0.0
    %158 = vmatpush1.msra.mxu0 %v78
    %159 = vmatprep.subr.mxu0 0.0
    %160 = vmatpush1.msra.mxu0 %v79
    %161 = vmatprep.subr.mxu0 0.0
    %162 = vmatpush1.msra.mxu0 %v80
    %163 = vmatprep.subr.mxu0 0.0
    %164 = vmatpush1.msra.mxu0 %v81
    %165 = vmatprep.subr.mxu0 0.0
    %166 = vmatpush1.msra.mxu0 %v82
    %167 = vmatprep.subr.mxu0 0.0
    %168 = vmatpush1.msra.mxu0 %v83
    %169 = vmatprep.subr.mxu0 0.0
    %170 = vmatpush1.msra.mxu0 %v84
    %171 = vmatprep.subr.mxu0 0.0
    %172 = vmatpush1.msra.mxu0 %v85
    %173 = vmatprep.subr.mxu0 0.0
    %174 = vmatpush1.msra.mxu0 %v86
    %175 = vmatprep.subr.mxu0 0.0
    %176 = vmatpush1.msra.mxu0 %v87
    %177 = vmatprep.subr.mxu0 0.0
    %178 = vmatpush1.msra.mxu0 %v88
    %179 = vmatprep.subr.mxu0 0.0
    %180 = vmatpush1.msra.mxu0 %v89
    %181 = vmatprep.subr.mxu0 0.0
    %182 = vmatpush1.msra.mxu0 %v90
    %183 = vmatprep.subr.mxu0 0.0
    %184 = vmatpush1.msra.mxu0 %v91
    %185 = vmatprep.subr.mxu0 0.0
    %186 = vmatpush1.msra.mxu0 %v92
    %187 = vmatprep.subr.mxu0 0.0
    %188 = vmatpush1.msra.mxu0 %v93
    %189 = vmatprep.subr.mxu0 0.0
    %190 = vmatpush1.msra.mxu0 %v94
    %191 = vmatprep.subr.mxu0 0.0
    %192 = vmatpush1.msra.mxu0 %v95
    %193 = vmatprep.subr.mxu0 0.0
    %194 = vmatpush1.msra.mxu0 %v96
    %195 = vmatprep.subr.mxu0 0.0
    %196 = vmatpush1.msra.mxu0 %v97
    %197 = vmatprep.subr.mxu0 0.0
    %198 = vmatpush1.msra.mxu0 %v98
    %199 = vmatprep.subr.mxu0 0.0
    %200 = vmatpush1.msra.mxu0 %v99
    %201 = vmatprep.subr.mxu0 0.0
    %202 = vmatpush1.msra.mxu0 %v100
    %203 = vmatprep.subr.mxu0 0.0
    %204 = vmatpush1.msra.mxu0 %v101
    %205 = vmatprep.mubr.f32.mxu0 %v55
    %206 = vmatmul.mubr.f32.gmra.mrb[0].mxu0 %v54
    %v207 = vpop.f32.mrb[0].mxu0
    %v208 = vadd.f32 %v139, %v207
    %v209 = vpop.f32.mrb[0].mxu0
    %210 = vmatprep.mubr.f32.mxu0 %v59
    %211 = vmatmul.mubr.f32.gmra.mrb[0].mxu0 %v58
    %v212 = vpop.f32.mrb[0].mxu0
    %v213 = vadd.f32 %v139, %v212
    %v214 = vpop.f32.mrb[0].mxu0
    %215 = vmatprep.mubr.f32.mxu0 %v63
    %216 = vmatmul.mubr.f32.gmra.mrb[0].mxu0 %v62
    %v217 = vpop.f32.mrb[0].mxu0
    %v218 = vadd.f32 %v139, %v217
    %v219 = vpop.f32.mrb[0].mxu0
    %220 = vmatprep.mubr.f32.mxu0 %v67
    %221 = vmatmul.mubr.f32.gmra.mrb[0].mxu0 %v66
    %v222 = vpop.f32.mrb[0].mxu0
    %v223 = vadd.f32 %v139, %v222
    %v224 = vpop.f32.mrb[0].mxu0
    %225 = vdwg.mxu0
    %226 = vmatprep.subr.mxu0 0.0
    %227 = vmatpush1.msra.mxu0 %v102
    %228 = vmatprep.subr.mxu0 0.0
    %229 = vmatpush1.msra.mxu0 %v103
    %230 = vmatprep.subr.mxu0 0.0
    %231 = vmatpush1.msra.mxu0 %v104
    %232 = vmatprep.subr.mxu0 0.0
    %233 = vmatpush1.msra.mxu0 %v105
    %234 = vmatprep.subr.mxu0 0.0
    %235 = vmatpush1.msra.mxu0 %v106
    %236 = vmatprep.subr.mxu0 0.0
    %237 = vmatpush1.msra.mxu0 %v107
    %238 = vmatprep.subr.mxu0 0.0
    %239 = vmatpush1.msra.mxu0 %v108
    %240 = vmatprep.subr.mxu0 0.0
    %241 = vmatpush1.msra.mxu0 %v109
    %242 = vmatprep.subr.mxu0 0.0
    %243 = vmatpush1.msra.mxu0 %v110
    %244 = vmatprep.subr.mxu0 0.0
    %245 = vmatpush1.msra.mxu0 %v111
    %246 = vmatprep.subr.mxu0 0.0
    %247 = vmatpush1.msra.mxu0 %v112
    %248 = vmatprep.subr.mxu0 0.0
    %249 = vmatpush1.msra.mxu0 %v113
    %250 = vmatprep.subr.mxu0 0.0
    %251 = vmatpush1.msra.mxu0 %v114
    %252 = vmatprep.subr.mxu0 0.0
    %253 = vmatpush1.msra.mxu0 %v115
    %254 = vmatprep.subr.mxu0 0.0
    %255 = vmatpush1.msra.mxu0 %v116
    %256 = vmatprep.subr.mxu0 0.0
    %257 = vmatpush1.msra.mxu0 %v117
    %258 = vmatprep.subr.mxu0 0.0
    %259 = vmatpush1.msra.mxu0 %v118
    %260 = vmatprep.subr.mxu0 0.0
    %261 = vmatpush1.msra.mxu0 %v119
    %262 = vmatprep.subr.mxu0 0.0
    %263 = vmatpush1.msra.mxu0 %v120
    %264 = vmatprep.subr.mxu0 0.0
    %265 = vmatpush1.msra.mxu0 %v121
    %266 = vmatprep.subr.mxu0 0.0
    %267 = vmatpush1.msra.mxu0 %v122
    %268 = vmatprep.subr.mxu0 0.0
    %269 = vmatpush1.msra.mxu0 %v123
    %270 = vmatprep.subr.mxu0 0.0
    %271 = vmatpush1.msra.mxu0 %v124
    %272 = vmatprep.subr.mxu0 0.0
    %273 = vmatpush1.msra.mxu0 %v125
    %274 = vmatprep.subr.mxu0 0.0
    %275 = vmatpush1.msra.mxu0 %v126
    %276 = vmatprep.subr.mxu0 0.0
    %277 = vmatpush1.msra.mxu0 %v127
    %278 = vmatprep.subr.mxu0 0.0
    %279 = vmatpush1.msra.mxu0 %v128
    %280 = vmatprep.subr.mxu0 0.0
    %281 = vmatpush1.msra.mxu0 %v129
    %282 = vmatprep.subr.mxu0 0.0
    %283 = vmatpush1.msra.mxu0 %v130
    %284 = vmatprep.subr.mxu0 0.0
    %285 = vmatpush1.msra.mxu0 %v131
    %286 = vmatprep.subr.mxu0 0.0
    %287 = vmatpush1.msra.mxu0 %v132
    %288 = vmatprep.subr.mxu0 0.0
    %289 = vmatpush1.msra.mxu0 %v133
    %290 = vmatprep.mubr.f32.mxu0 %v57
    %291 = vmatmul.mubr.f32.gmra.mrb[0].mxu0 %v56
    %v292 = vpop.f32.mrb[0].mxu0
    %v293 = vadd.f32 %v208, %v292
    %v294 = vpop.f32.mrb[0].mxu0
    %295 = vmatprep.mubr.f32.mxu0 %v61
    %296 = vmatmul.mubr.f32.gmra.mrb[0].mxu0 %v60
    %v297 = vpop.f32.mrb[0].mxu0
    %v298 = vadd.f32 %v213, %v297
    %v299 = vpop.f32.mrb[0].mxu0
    %300 = vmatprep.mubr.f32.mxu0 %v65
    %301 = vmatmul.mubr.f32.gmra.mrb[0].mxu0 %v64
    %v302 = vpop.f32.mrb[0].mxu0
    %v303 = vadd.f32 %v218, %v302
    %v304 = vpop.f32.mrb[0].mxu0
    %305 = vmatprep.mubr.f32.mxu0 %v69
    %306 = vmatmul.mubr.f32.gmra.mrb[0].mxu0 %v68
    %v307 = vpop.f32.mrb[0].mxu0
    %v308 = vadd.f32 %v223, %v307
    %v309 = vpop.f32.mrb[0].mxu0
    %310 = vdwg.mxu0
    %v311 = vmax.f32 %v293, 0.0
    %v312 = vmax.f32 %v298, 0.0
    %v313 = vmax.f32 %v303, 0.0
    %v314 = vmax.f32 %v308, 0.0
    %vm315 = vcmask 523264
    %316 = vst.msk [vmem:[#allocation8] sm:$0xff] %vm315, %v311
    %317 = vst.msk [vmem:[#allocation8 + $0x8] sm:$0xff] %vm315, %v312
    %318 = vst.msk [vmem:[#allocation8 + $0x10] sm:$0xff] %vm315, %v313
    %319 = vst.msk [vmem:[#allocation8 + $0x18] sm:$0xff] %vm315, %v314
    // Predicated region
    $region26: #{a2c_forward.5} parent=1 // pred_check
      _
    $region27: #{a2c_forward.5} parent=1 // pred_check_branch
      %321 = sbr.rel (0) target = $region29
    $region28: #{a2c_forward.5} parent=1 // pred_region
      %s323 = ssub.s32 512, 512
      %324 = vsyncadd [#allocation4], %s323
      %s325 = sshll.u32 [#allocation8], 4
      %s326 = int_to_ptr.vmem [resolvable:$true] %s325
      %331 = dma.vmem_to_hbm [thread:$0]  %s326, 512, %s3, [#allocation4], 128, 128, 8
    $region29: #{a2c_forward.5} parent=1 // pred_fallthru
      _
    // Predicated region
    $region30: #{a2c_forward.5} parent=1 // pred_check
      _
    $region31: #{a2c_forward.5} parent=1 // pred_check_branch
      %333 = sbr.rel (0) target = $region33
    $region32: #{a2c_forward.5} parent=1 // pred_region
      %334 = dma.done [#allocation4], 512
    $region33: #{a2c_forward.5} parent=1 // pred_fallthru
      _
    %335 = vsyncpa [#allocation3], 1
    %336 = vsyncpa [#allocation6], 1
    %337 = vsyncpa [#allocation4], 1

// kernel: a2c_forward.6
$region0: #{a2c_forward.6}
  #allocation0 [shape = 'u32[]', space=smem, size = 0x4, offset = 0x4, fixed_abs, tag = 'smem constant byte address 0x4 - core index']
  #allocation1 [shape = 'u32[144,128]{1,0:T(1,128)}', space=vmem, size = 0x12000, scoped, tag = 'internal scratch']
  %s0 = inlined_call_operand.hbm [shape: f32[8,640], index: 0, kind: input, shape index: {}]
  %s1 = inlined_call_operand.hbm [shape: f32[640,64], index: 1, kind: input, shape index: {}]
  %s2 = inlined_call_operand.hbm [shape: f32[1,64], index: 2, kind: input, shape index: {}]
  %s3 = inlined_call_operand.hbm [shape: f32[8,64], index: 3, kind: output, shape index: {}]
  %s4 = sld [smem:[#allocation0]]
  $region34: #{a2c_forward.6} parent=0
    _
  %s6 = ssub.s32 1, %s4
  %s7 = scalar_select 0, %s6, %s4
  $region1: #{a2c_forward.6} parent=0
    #allocation2 [shape = 'u8[20480]{0}', space=vmem, size = 0x5000, scoped, tag = 'input window, operand 0, single buffered']
    #allocation3 [shape = 's32[1]{0}', space=sflag, size = 0x4, scoped, tag = 'scoped memory for a2c_forward.6']
    #allocation4 [shape = 's32[1]{0}', space=sflag, size = 0x4, scoped, tag = 'scoped memory for a2c_forward.6']
    #allocation5 [shape = 'u8[327680]{0}', space=vmem, size = 0x50000, scoped, tag = 'input window, operand 1, single buffered']
    #allocation6 [shape = 's32[1]{0}', space=sflag, size = 0x4, scoped, tag = 'scoped memory for a2c_forward.6']
    #allocation7 [shape = 'u8[512]{0}', space=vmem, size = 0x400, scoped, tag = 'input window, operand 2, single buffered']
    #allocation8 [shape = 'u8[4096]{0}', space=vmem, size = 0x1000, scoped, tag = 'output window, operand 0, single buffered']
    %8 = vsyncpa [#allocation3], 0
    %9 = vsyncpa [#allocation6], 0
    %10 = vsyncpa [#allocation4], 0
    // Predicated region
    $region2: #{a2c_forward.6} parent=1 // pred_check
      _
    $region3: #{a2c_forward.6} parent=1 // pred_check_branch
      %12 = sbr.rel (0) target = $region5
    $region4: #{a2c_forward.6} parent=1 // pred_region
      %s14 = ssub.s32 640, 640
      %15 = vsyncadd [#allocation3], %s14
      %s17 = sshll.u32 [#allocation2], 4
      %s18 = int_to_ptr.vmem [resolvable:$true] %s17
      %20 = dma.hbm_to_vmem [thread:$0]  %s0, 640, %s18, [#allocation3]
    $region5: #{a2c_forward.6} parent=1 // pred_fallthru
      _
    // Predicated region
    $region6: #{a2c_forward.6} parent=1 // pred_check
      _
    $region7: #{a2c_forward.6} parent=1 // pred_check_branch
      %22 = sbr.rel (0) target = $region9
    $region8: #{a2c_forward.6} parent=1 // pred_region
      %s24 = ssub.s32 10240, 10240
      %25 = vsyncadd [#allocation6], %s24
      %s26 = sshll.u32 [#allocation5], 4
      %s27 = int_to_ptr.vmem [resolvable:$true] %s26
      %32 = dma.hbm_to_vmem [thread:$0]  %s1, 10240, %s27, [#allocation6], 128, 128, 8
    $region9: #{a2c_forward.6} parent=1 // pred_fallthru
      _
    // Predicated region
    $region10: #{a2c_forward.6} parent=1 // pred_check
      _
    $region11: #{a2c_forward.6} parent=1 // pred_check_branch
      %34 = sbr.rel (0) target = $region13
    $region12: #{a2c_forward.6} parent=1 // pred_region
      %s36 = ssub.s32 16, 16
      %37 = vsyncadd [#allocation6], %s36
      %s39 = sshll.u32 [#allocation7], 4
      %s40 = int_to_ptr.vmem [resolvable:$true] %s39
      %42 = dma.hbm_to_vmem [thread:$0]  %s2, 16, %s40, [#allocation6]
    $region13: #{a2c_forward.6} parent=1 // pred_fallthru
      _
    // Predicated region
    $region14: #{a2c_forward.6} parent=1 // pred_check
      _
    $region15: #{a2c_forward.6} parent=1 // pred_check_branch
      %44 = sbr.rel (0) target = $region17
    $region16: #{a2c_forward.6} parent=1 // pred_region
      %45 = dma.done [#allocation3], 640
    $region17: #{a2c_forward.6} parent=1 // pred_fallthru
      _
    // Predicated region
    $region18: #{a2c_forward.6} parent=1 // pred_check
      _
    $region19: #{a2c_forward.6} parent=1 // pred_check_branch
      %47 = sbr.rel (0) target = $region21
    $region20: #{a2c_forward.6} parent=1 // pred_region
      %48 = dma.done [#allocation6], 10240
    $region21: #{a2c_forward.6} parent=1 // pred_fallthru
      _
    // Predicated region
    $region22: #{a2c_forward.6} parent=1 // pred_check
      _
    $region23: #{a2c_forward.6} parent=1 // pred_check_branch
      %50 = sbr.rel (0) target = $region25
    $region24: #{a2c_forward.6} parent=1 // pred_region
      %51 = dma.done [#allocation6], 16
    $region25: #{a2c_forward.6} parent=1 // pred_fallthru
      _
    %v52 = vld [vmem:[#allocation2] sm:$0xff]
    %v53 = vld [vmem:[#allocation2 + $0x8] sm:$0xff]
    %v54 = vld [vmem:[#allocation2 + $0x10] sm:$0xff]
    %v55 = vld [vmem:[#allocation2 + $0x18] sm:$0xff]
    %v56 = vld [vmem:[#allocation2 + $0x20] sm:$0xff]
    %v57 = vld [vmem:[#allocation5] sm:$0xff]
    %v58 = vld [vmem:[#allocation5 + $0x8] sm:$0xff]
    %v59 = vld [vmem:[#allocation5 + $0x10] sm:$0xff]
    %v60 = vld [vmem:[#allocation5 + $0x18] sm:$0xff]
    %v61 = vld [vmem:[#allocation5 + $0x20] sm:$0xff]
    %v62 = vld [vmem:[#allocation5 + $0x28] sm:$0xff]
    %v63 = vld [vmem:[#allocation5 + $0x30] sm:$0xff]
    %v64 = vld [vmem:[#allocation5 + $0x38] sm:$0xff]
    %v65 = vld [vmem:[#allocation5 + $0x40] sm:$0xff]
    %v66 = vld [vmem:[#allocation5 + $0x48] sm:$0xff]
    %v67 = vld [vmem:[#allocation5 + $0x50] sm:$0xff]
    %v68 = vld [vmem:[#allocation5 + $0x58] sm:$0xff]
    %v69 = vld [vmem:[#allocation5 + $0x60] sm:$0xff]
    %v70 = vld [vmem:[#allocation5 + $0x68] sm:$0xff]
    %v71 = vld [vmem:[#allocation5 + $0x70] sm:$0xff]
    %v72 = vld [vmem:[#allocation5 + $0x78] sm:$0xff]
    %v73 = vld [vmem:[#allocation5 + $0x80] sm:$0xff]
    %v74 = vld [vmem:[#allocation5 + $0x88] sm:$0xff]
    %v75 = vld [vmem:[#allocation5 + $0x90] sm:$0xff]
    %v76 = vld [vmem:[#allocation5 + $0x98] sm:$0xff]
    %v77 = vld [vmem:[#allocation5 + $0xa0] sm:$0xff]
    %v78 = vld [vmem:[#allocation5 + $0xa8] sm:$0xff]
    %v79 = vld [vmem:[#allocation5 + $0xb0] sm:$0xff]
    %v80 = vld [vmem:[#allocation5 + $0xb8] sm:$0xff]
    %v81 = vld [vmem:[#allocation5 + $0xc0] sm:$0xff]
    %v82 = vld [vmem:[#allocation5 + $0xc8] sm:$0xff]
    %v83 = vld [vmem:[#allocation5 + $0xd0] sm:$0xff]
    %v84 = vld [vmem:[#allocation5 + $0xd8] sm:$0xff]
    %v85 = vld [vmem:[#allocation5 + $0xe0] sm:$0xff]
    %v86 = vld [vmem:[#allocation5 + $0xe8] sm:$0xff]
    %v87 = vld [vmem:[#allocation5 + $0xf0] sm:$0xff]
    %v88 = vld [vmem:[#allocation5 + $0xf8] sm:$0xff]
    %v89 = vld [vmem:[#allocation5 + $0x100] sm:$0xff]
    %v90 = vld [vmem:[#allocation5 + $0x108] sm:$0xff]
    %v91 = vld [vmem:[#allocation5 + $0x110] sm:$0xff]
    %v92 = vld [vmem:[#allocation5 + $0x118] sm:$0xff]
    %v93 = vld [vmem:[#allocation5 + $0x120] sm:$0xff]
    %v94 = vld [vmem:[#allocation5 + $0x128] sm:$0xff]
    %v95 = vld [vmem:[#allocation5 + $0x130] sm:$0xff]
    %v96 = vld [vmem:[#allocation5 + $0x138] sm:$0xff]
    %v97 = vld [vmem:[#allocation5 + $0x140] sm:$0xff]
    %v98 = vld [vmem:[#allocation5 + $0x148] sm:$0xff]
    %v99 = vld [vmem:[#allocation5 + $0x150] sm:$0xff]
    %v100 = vld [vmem:[#allocation5 + $0x158] sm:$0xff]
    %v101 = vld [vmem:[#allocation5 + $0x160] sm:$0xff]
    %v102 = vld [vmem:[#allocation5 + $0x168] sm:$0xff]
    %v103 = vld [vmem:[#allocation5 + $0x170] sm:$0xff]
    %v104 = vld [vmem:[#allocation5 + $0x178] sm:$0xff]
    %v105 = vld [vmem:[#allocation5 + $0x180] sm:$0xff]
    %v106 = vld [vmem:[#allocation5 + $0x188] sm:$0xff]
    %v107 = vld [vmem:[#allocation5 + $0x190] sm:$0xff]
    %v108 = vld [vmem:[#allocation5 + $0x198] sm:$0xff]
    %v109 = vld [vmem:[#allocation5 + $0x1a0] sm:$0xff]
    %v110 = vld [vmem:[#allocation5 + $0x1a8] sm:$0xff]
    %v111 = vld [vmem:[#allocation5 + $0x1b0] sm:$0xff]
    %v112 = vld [vmem:[#allocation5 + $0x1b8] sm:$0xff]
    %v113 = vld [vmem:[#allocation5 + $0x1c0] sm:$0xff]
    %v114 = vld [vmem:[#allocation5 + $0x1c8] sm:$0xff]
    %v115 = vld [vmem:[#allocation5 + $0x1d0] sm:$0xff]
    %v116 = vld [vmem:[#allocation5 + $0x1d8] sm:$0xff]
    %v117 = vld [vmem:[#allocation5 + $0x1e0] sm:$0xff]
    %v118 = vld [vmem:[#allocation5 + $0x1e8] sm:$0xff]
    %v119 = vld [vmem:[#allocation5 + $0x1f0] sm:$0xff]
    %v120 = vld [vmem:[#allocation5 + $0x1f8] sm:$0xff]
    %v121 = vld [vmem:[#allocation5 + $0x200] sm:$0xff]
    %v122 = vld [vmem:[#allocation5 + $0x208] sm:$0xff]
    %v123 = vld [vmem:[#allocation5 + $0x210] sm:$0xff]
    %v124 = vld [vmem:[#allocation5 + $0x218] sm:$0xff]
    %v125 = vld [vmem:[#allocation5 + $0x220] sm:$0xff]
    %v126 = vld [vmem:[#allocation5 + $0x228] sm:$0xff]
    %v127 = vld [vmem:[#allocation5 + $0x230] sm:$0xff]
    %v128 = vld [vmem:[#allocation5 + $0x238] sm:$0xff]
    %v129 = vld [vmem:[#allocation5 + $0x240] sm:$0xff]
    %v130 = vld [vmem:[#allocation5 + $0x248] sm:$0xff]
    %v131 = vld [vmem:[#allocation5 + $0x250] sm:$0xff]
    %v132 = vld [vmem:[#allocation5 + $0x258] sm:$0xff]
    %v133 = vld [vmem:[#allocation5 + $0x260] sm:$0xff]
    %v134 = vld [vmem:[#allocation5 + $0x268] sm:$0xff]
    %v135 = vld [vmem:[#allocation5 + $0x270] sm:$0xff]
    %v136 = vld [vmem:[#allocation5 + $0x278] sm:$0xff]
    %v137 = vld [vmem:[#allocation7] sm:$0x1]
    %v139 = vlaneseq
    %v140 = vshrl.u32 %v139, 7
    %v141 = vsub.s32 0, %v140
    %v142 = vrot.slane %v137, %v141
    %144 = vmatprep.subr.mxu0 0.0
    %145 = vmatpush1.msra.mxu0 %v57
    %146 = vmatprep.subr.mxu0 0.0
    %147 = vmatpush1.msra.mxu0 %v58
    %148 = vmatprep.subr.mxu0 0.0
    %149 = vmatpush1.msra.mxu0 %v59
    %150 = vmatprep.subr.mxu0 0.0
    %151 = vmatpush1.msra.mxu0 %v60
    %152 = vmatprep.subr.mxu0 0.0
    %153 = vmatpush1.msra.mxu0 %v61
    %154 = vmatprep.subr.mxu0 0.0
    %155 = vmatpush1.msra.mxu0 %v62
    %156 = vmatprep.subr.mxu0 0.0
    %157 = vmatpush1.msra.mxu0 %v63
    %158 = vmatprep.subr.mxu0 0.0
    %159 = vmatpush1.msra.mxu0 %v64
    %160 = vmatprep.subr.mxu0 0.0
    %161 = vmatpush1.msra.mxu0 %v65
    %162 = vmatprep.subr.mxu0 0.0
    %163 = vmatpush1.msra.mxu0 %v66
    %164 = vmatprep.subr.mxu0 0.0
    %165 = vmatpush1.msra.mxu0 %v67
    %166 = vmatprep.subr.mxu0 0.0
    %167 = vmatpush1.msra.mxu0 %v68
    %168 = vmatprep.subr.mxu0 0.0
    %169 = vmatpush1.msra.mxu0 %v69
    %170 = vmatprep.subr.mxu0 0.0
    %171 = vmatpush1.msra.mxu0 %v70
    %172 = vmatprep.subr.mxu0 0.0
    %173 = vmatpush1.msra.mxu0 %v71
    %174 = vmatprep.subr.mxu0 0.0
    %175 = vmatpush1.msra.mxu0 %v72
    %176 = vmatprep.subr.mxu0 0.0
    %177 = vmatpush1.msra.mxu0 %v73
    %178 = vmatprep.subr.mxu0 0.0
    %179 = vmatpush1.msra.mxu0 %v74
    %180 = vmatprep.subr.mxu0 0.0
    %181 = vmatpush1.msra.mxu0 %v75
    %182 = vmatprep.subr.mxu0 0.0
    %183 = vmatpush1.msra.mxu0 %v76
    %184 = vmatprep.subr.mxu0 0.0
    %185 = vmatpush1.msra.mxu0 %v77
    %186 = vmatprep.subr.mxu0 0.0
    %187 = vmatpush1.msra.mxu0 %v78
    %188 = vmatprep.subr.mxu0 0.0
    %189 = vmatpush1.msra.mxu0 %v79
    %190 = vmatprep.subr.mxu0 0.0
    %191 = vmatpush1.msra.mxu0 %v80
    %192 = vmatprep.subr.mxu0 0.0
    %193 = vmatpush1.msra.mxu0 %v81
    %194 = vmatprep.subr.mxu0 0.0
    %195 = vmatpush1.msra.mxu0 %v82
    %196 = vmatprep.subr.mxu0 0.0
    %197 = vmatpush1.msra.mxu0 %v83
    %198 = vmatprep.subr.mxu0 0.0
    %199 = vmatpush1.msra.mxu0 %v84
    %200 = vmatprep.subr.mxu0 0.0
    %201 = vmatpush1.msra.mxu0 %v85
    %202 = vmatprep.subr.mxu0 0.0
    %203 = vmatpush1.msra.mxu0 %v86
    %204 = vmatprep.subr.mxu0 0.0
    %205 = vmatpush1.msra.mxu0 %v87
    %206 = vmatprep.subr.mxu0 0.0
    %207 = vmatpush1.msra.mxu0 %v88
    %208 = vmatprep.mubr.f32.mxu0 %v53
    %209 = vmatmul.mubr.f32.gmra.mrb[0].mxu0 %v52
    %v210 = vpop.f32.mrb[0].mxu0
    %v211 = vadd.f32 %v142, %v210
    %v212 = vpop.f32.mrb[0].mxu0
    %213 = vdwg.mxu0
    %214 = vmatprep.subr.mxu0 0.0
    %215 = vmatpush1.msra.mxu0 %v89
    %216 = vmatprep.subr.mxu0 0.0
    %217 = vmatpush1.msra.mxu0 %v90
    %218 = vmatprep.subr.mxu0 0.0
    %219 = vmatpush1.msra.mxu0 %v91
    %220 = vmatprep.subr.mxu0 0.0
    %221 = vmatpush1.msra.mxu0 %v92
    %222 = vmatprep.subr.mxu0 0.0
    %223 = vmatpush1.msra.mxu0 %v93
    %224 = vmatprep.subr.mxu0 0.0
    %225 = vmatpush1.msra.mxu0 %v94
    %226 = vmatprep.subr.mxu0 0.0
    %227 = vmatpush1.msra.mxu0 %v95
    %228 = vmatprep.subr.mxu0 0.0
    %229 = vmatpush1.msra.mxu0 %v96
    %230 = vmatprep.subr.mxu0 0.0
    %231 = vmatpush1.msra.mxu0 %v97
    %232 = vmatprep.subr.mxu0 0.0
    %233 = vmatpush1.msra.mxu0 %v98
    %234 = vmatprep.subr.mxu0 0.0
    %235 = vmatpush1.msra.mxu0 %v99
    %236 = vmatprep.subr.mxu0 0.0
    %237 = vmatpush1.msra.mxu0 %v100
    %238 = vmatprep.subr.mxu0 0.0
    %239 = vmatpush1.msra.mxu0 %v101
    %240 = vmatprep.subr.mxu0 0.0
    %241 = vmatpush1.msra.mxu0 %v102
    %242 = vmatprep.subr.mxu0 0.0
    %243 = vmatpush1.msra.mxu0 %v103
    %244 = vmatprep.subr.mxu0 0.0
    %245 = vmatpush1.msra.mxu0 %v104
    %246 = vmatprep.subr.mxu0 0.0
    %247 = vmatpush1.msra.mxu0 %v105
    %248 = vmatprep.subr.mxu0 0.0
    %249 = vmatpush1.msra.mxu0 %v106
    %250 = vmatprep.subr.mxu0 0.0
    %251 = vmatpush1.msra.mxu0 %v107
    %252 = vmatprep.subr.mxu0 0.0
    %253 = vmatpush1.msra.mxu0 %v108
    %254 = vmatprep.subr.mxu0 0.0
    %255 = vmatpush1.msra.mxu0 %v109
    %256 = vmatprep.subr.mxu0 0.0
    %257 = vmatpush1.msra.mxu0 %v110
    %258 = vmatprep.subr.mxu0 0.0
    %259 = vmatpush1.msra.mxu0 %v111
    %260 = vmatprep.subr.mxu0 0.0
    %261 = vmatpush1.msra.mxu0 %v112
    %262 = vmatprep.subr.mxu0 0.0
    %263 = vmatpush1.msra.mxu0 %v113
    %264 = vmatprep.subr.mxu0 0.0
    %265 = vmatpush1.msra.mxu0 %v114
    %266 = vmatprep.subr.mxu0 0.0
    %267 = vmatpush1.msra.mxu0 %v115
    %268 = vmatprep.subr.mxu0 0.0
    %269 = vmatpush1.msra.mxu0 %v116
    %270 = vmatprep.subr.mxu0 0.0
    %271 = vmatpush1.msra.mxu0 %v117
    %272 = vmatprep.subr.mxu0 0.0
    %273 = vmatpush1.msra.mxu0 %v118
    %274 = vmatprep.subr.mxu0 0.0
    %275 = vmatpush1.msra.mxu0 %v119
    %276 = vmatprep.subr.mxu0 0.0
    %277 = vmatpush1.msra.mxu0 %v120
    %278 = vmatprep.mubr.f32.mxu0 %v55
    %279 = vmatmul.mubr.f32.gmra.mrb[0].mxu0 %v54
    %v280 = vpop.f32.mrb[0].mxu0
    %v281 = vadd.f32 %v211, %v280
    %v282 = vpop.f32.mrb[0].mxu0
    %283 = vdwg.mxu0
    %284 = vmatprep.subr.mxu0 0.0
    %285 = vmatpush1.msra.mxu0 %v121
    %286 = vmatprep.subr.mxu0 0.0
    %287 = vmatpush1.msra.mxu0 %v122
    %288 = vmatprep.subr.mxu0 0.0
    %289 = vmatpush1.msra.mxu0 %v123
    %290 = vmatprep.subr.mxu0 0.0
    %291 = vmatpush1.msra.mxu0 %v124
    %292 = vmatprep.subr.mxu0 0.0
    %293 = vmatpush1.msra.mxu0 %v125
    %294 = vmatprep.subr.mxu0 0.0
    %295 = vmatpush1.msra.mxu0 %v126
    %296 = vmatprep.subr.mxu0 0.0
    %297 = vmatpush1.msra.mxu0 %v127
    %298 = vmatprep.subr.mxu0 0.0
    %299 = vmatpush1.msra.mxu0 %v128
    %300 = vmatprep.subr.mxu0 0.0
    %301 = vmatpush1.msra.mxu0 %v129
    %302 = vmatprep.subr.mxu0 0.0
    %303 = vmatpush1.msra.mxu0 %v130
    %304 = vmatprep.subr.mxu0 0.0
    %305 = vmatpush1.msra.mxu0 %v131
    %306 = vmatprep.subr.mxu0 0.0
    %307 = vmatpush1.msra.mxu0 %v132
    %308 = vmatprep.subr.mxu0 0.0
    %309 = vmatpush1.msra.mxu0 %v133
    %310 = vmatprep.subr.mxu0 0.0
    %311 = vmatpush1.msra.mxu0 %v134
    %312 = vmatprep.subr.mxu0 0.0
    %313 = vmatpush1.msra.mxu0 %v135
    %314 = vmatprep.subr.mxu0 0.0
    %315 = vmatpush1.msra.mxu0 %v136
    %316 = vmatprep.subr.mxu0 0.0
    %317 = vmatpush1.msra.mxu0 0.0
    %318 = vmatprep.subr.mxu0 0.0
    %319 = vmatpush1.msra.mxu0 0.0
    %320 = vmatprep.subr.mxu0 0.0
    %321 = vmatpush1.msra.mxu0 0.0
    %322 = vmatprep.subr.mxu0 0.0
    %323 = vmatpush1.msra.mxu0 0.0
    %324 = vmatprep.subr.mxu0 0.0
    %325 = vmatpush1.msra.mxu0 0.0
    %326 = vmatprep.subr.mxu0 0.0
    %327 = vmatpush1.msra.mxu0 0.0
    %328 = vmatprep.subr.mxu0 0.0
    %329 = vmatpush1.msra.mxu0 0.0
    %330 = vmatprep.subr.mxu0 0.0
    %331 = vmatpush1.msra.mxu0 0.0
    %332 = vmatprep.subr.mxu0 0.0
    %333 = vmatpush1.msra.mxu0 0.0
    %334 = vmatprep.subr.mxu0 0.0
    %335 = vmatpush1.msra.mxu0 0.0
    %336 = vmatprep.subr.mxu0 0.0
    %337 = vmatpush1.msra.mxu0 0.0
    %338 = vmatprep.subr.mxu0 0.0
    %339 = vmatpush1.msra.mxu0 0.0
    %340 = vmatprep.subr.mxu0 0.0
    %341 = vmatpush1.msra.mxu0 0.0
    %342 = vmatprep.subr.mxu0 0.0
    %343 = vmatpush1.msra.mxu0 0.0
    %344 = vmatprep.subr.mxu0 0.0
    %345 = vmatpush1.msra.mxu0 0.0
    %346 = vmatprep.subr.mxu0 0.0
    %347 = vmatpush1.msra.mxu0 0.0
    %348 = vmatprep.mubr.f32.mxu0 0.0
    %349 = vmatmul.mubr.f32.gmra.mrb[0].mxu0 %v56
    %v350 = vpop.f32.mrb[0].mxu0
    %v351 = vadd.f32 %v281, %v350
    %v352 = vpop.f32.mrb[0].mxu0
    %353 = vdwg.mxu0
    %v354 = vmax.f32 %v351, 0.0
    %vm355 = vcmask 523264
    %356 = vst.msk [vmem:[#allocation8] sm:$0xff] %vm355, %v354
    // Predicated region
    $region26: #{a2c_forward.6} parent=1 // pred_check
      _
    $region27: #{a2c_forward.6} parent=1 // pred_check_branch
      %358 = sbr.rel (0) target = $region29
    $region28: #{a2c_forward.6} parent=1 // pred_region
      %s360 = ssub.s32 128, 128
      %361 = vsyncadd [#allocation4], %s360
      %s363 = sshll.u32 [#allocation8], 4
      %s364 = int_to_ptr.vmem [resolvable:$true] %s363
      %366 = dma.vmem_to_hbm [thread:$0]  %s364, 128, %s3, [#allocation4]
    $region29: #{a2c_forward.6} parent=1 // pred_fallthru
      _
    // Predicated region
    $region30: #{a2c_forward.6} parent=1 // pred_check
      _
    $region31: #{a2c_forward.6} parent=1 // pred_check_branch
      %368 = sbr.rel (0) target = $region33
    $region32: #{a2c_forward.6} parent=1 // pred_region
      %369 = dma.done [#allocation4], 128
    $region33: #{a2c_forward.6} parent=1 // pred_fallthru
      _
    %370 = vsyncpa [#allocation3], 1
    %371 = vsyncpa [#allocation6], 1
    %372 = vsyncpa [#allocation4], 1

// kernel: a2c_forward.7
$region0: #{a2c_forward.7}
  #allocation0 [shape = 'u32[]', space=smem, size = 0x4, offset = 0x4, fixed_abs, tag = 'smem constant byte address 0x4 - core index']
  #allocation1 [shape = 'u32[144,128]{1,0:T(1,128)}', space=vmem, size = 0x12000, scoped, tag = 'internal scratch']
  %s0 = inlined_call_operand.hbm [shape: f32[8,256], index: 0, kind: input, shape index: {}]
  %s1 = inlined_call_operand.hbm [shape: f32[256,512], index: 1, kind: input, shape index: {}]
  %s2 = inlined_call_operand.hbm [shape: f32[1,512], index: 2, kind: input, shape index: {}]
  %s3 = inlined_call_operand.hbm [shape: f32[512,128], index: 3, kind: input, shape index: {}]
  %s4 = inlined_call_operand.hbm [shape: f32[1,128], index: 4, kind: input, shape index: {}]
  %s5 = inlined_call_operand.hbm [shape: f32[8,128], index: 5, kind: output, shape index: {}]
  %s6 = sld [smem:[#allocation0]]
  $region50: #{a2c_forward.7} parent=0
    _
  %s8 = ssub.s32 1, %s6
  %s9 = scalar_select 0, %s8, %s6
  $region1: #{a2c_forward.7} parent=0
    #allocation2 [shape = 'u8[8192]{0}', space=vmem, size = 0x2000, scoped, tag = 'input window, operand 0, single buffered']
    #allocation3 [shape = 's32[1]{0}', space=sflag, size = 0x4, scoped, tag = 'scoped memory for a2c_forward.7']
    #allocation4 [shape = 's32[1]{0}', space=sflag, size = 0x4, scoped, tag = 'scoped memory for a2c_forward.7']
    #allocation5 [shape = 'u8[524288]{0}', space=vmem, size = 0x80000, scoped, tag = 'input window, operand 1, single buffered']
    #allocation6 [shape = 's32[1]{0}', space=sflag, size = 0x4, scoped, tag = 'scoped memory for a2c_forward.7']
    #allocation7 [shape = 'u8[2048]{0}', space=vmem, size = 0x800, scoped, tag = 'input window, operand 2, single buffered']
    #allocation8 [shape = 'u8[262144]{0}', space=vmem, size = 0x40000, scoped, tag = 'input window, operand 3, single buffered']
    #allocation9 [shape = 's32[1]{0}', space=sflag, size = 0x4, scoped, tag = 'scoped memory for a2c_forward.7']
    #allocation10 [shape = 'u8[512]{0}', space=vmem, size = 0x400, scoped, tag = 'input window, operand 4, single buffered']
    #allocation11 [shape = 'u8[4096]{0}', space=vmem, size = 0x1000, scoped, tag = 'output window, operand 0, single buffered']
    %10 = vsyncpa [#allocation3], 0
    %11 = vsyncpa [#allocation6], 0
    %12 = vsyncpa [#allocation9], 0
    %13 = vsyncpa [#allocation4], 0
    // Predicated region
    $region2: #{a2c_forward.7} parent=1 // pred_check
      _
    $region3: #{a2c_forward.7} parent=1 // pred_check_branch
      %15 = sbr.rel (0) target = $region5
    $region4: #{a2c_forward.7} parent=1 // pred_region
      %s17 = ssub.s32 256, 256
      %18 = vsyncadd [#allocation3], %s17
      %s20 = sshll.u32 [#allocation2], 4
      %s21 = int_to_ptr.vmem [resolvable:$true] %s20
      %23 = dma.hbm_to_vmem [thread:$0]  %s0, 256, %s21, [#allocation3]
    $region5: #{a2c_forward.7} parent=1 // pred_fallthru
      _
    // Predicated region
    $region6: #{a2c_forward.7} parent=1 // pred_check
      _
    $region7: #{a2c_forward.7} parent=1 // pred_check_branch
      %25 = sbr.rel (0) target = $region9
    $region8: #{a2c_forward.7} parent=1 // pred_region
      %s27 = ssub.s32 16384, 16384
      %28 = vsyncadd [#allocation6], %s27
      %s29 = sshll.u32 [#allocation5], 4
      %s30 = int_to_ptr.vmem [resolvable:$true] %s29
      %35 = dma.hbm_to_vmem [thread:$0]  %s1, 16384, %s30, [#allocation6], 512, 512, 32
    $region9: #{a2c_forward.7} parent=1 // pred_fallthru
      _
    // Predicated region
    $region10: #{a2c_forward.7} parent=1 // pred_check
      _
    $region11: #{a2c_forward.7} parent=1 // pred_check_branch
      %37 = sbr.rel (0) target = $region13
    $region12: #{a2c_forward.7} parent=1 // pred_region
      %s39 = ssub.s32 64, 64
      %40 = vsyncadd [#allocation6], %s39
      %s42 = sshll.u32 [#allocation7], 4
      %s43 = int_to_ptr.vmem [resolvable:$true] %s42
      %45 = dma.hbm_to_vmem [thread:$0]  %s2, 64, %s43, [#allocation6]
    $region13: #{a2c_forward.7} parent=1 // pred_fallthru
      _
    // Predicated region
    $region14: #{a2c_forward.7} parent=1 // pred_check
      _
    $region15: #{a2c_forward.7} parent=1 // pred_check_branch
      %47 = sbr.rel (0) target = $region17
    $region16: #{a2c_forward.7} parent=1 // pred_region
      %s49 = ssub.s32 8192, 8192
      %50 = vsyncadd [#allocation9], %s49
      %s51 = sshll.u32 [#allocation8], 4
      %s52 = int_to_ptr.vmem [resolvable:$true] %s51
      %57 = dma.hbm_to_vmem [thread:$0]  %s3, 8192, %s52, [#allocation9], 128, 128, 8
    $region17: #{a2c_forward.7} parent=1 // pred_fallthru
      _
    // Predicated region
    $region18: #{a2c_forward.7} parent=1 // pred_check
      _
    $region19: #{a2c_forward.7} parent=1 // pred_check_branch
      %59 = sbr.rel (0) target = $region21
    $region20: #{a2c_forward.7} parent=1 // pred_region
      %s61 = ssub.s32 16, 16
      %62 = vsyncadd [#allocation9], %s61
      %s64 = sshll.u32 [#allocation10], 4
      %s65 = int_to_ptr.vmem [resolvable:$true] %s64
      %67 = dma.hbm_to_vmem [thread:$0]  %s4, 16, %s65, [#allocation9]
    $region21: #{a2c_forward.7} parent=1 // pred_fallthru
      _
    // Predicated region
    $region22: #{a2c_forward.7} parent=1 // pred_check
      _
    $region23: #{a2c_forward.7} parent=1 // pred_check_branch
      %69 = sbr.rel (0) target = $region25
    $region24: #{a2c_forward.7} parent=1 // pred_region
      %70 = dma.done [#allocation3], 256
    $region25: #{a2c_forward.7} parent=1 // pred_fallthru
      _
    // Predicated region
    $region26: #{a2c_forward.7} parent=1 // pred_check
      _
    $region27: #{a2c_forward.7} parent=1 // pred_check_branch
      %72 = sbr.rel (0) target = $region29
    $region28: #{a2c_forward.7} parent=1 // pred_region
      %73 = dma.done [#allocation6], 16384
    $region29: #{a2c_forward.7} parent=1 // pred_fallthru
      _
    // Predicated region
    $region30: #{a2c_forward.7} parent=1 // pred_check
      _
    $region31: #{a2c_forward.7} parent=1 // pred_check_branch
      %75 = sbr.rel (0) target = $region33
    $region32: #{a2c_forward.7} parent=1 // pred_region
      %76 = dma.done [#allocation6], 64
    $region33: #{a2c_forward.7} parent=1 // pred_fallthru
      _
    // Predicated region
    $region34: #{a2c_forward.7} parent=1 // pred_check
      _
    $region35: #{a2c_forward.7} parent=1 // pred_check_branch
      %78 = sbr.rel (0) target = $region37
    $region36: #{a2c_forward.7} parent=1 // pred_region
      %79 = dma.done [#allocation9], 8192
    $region37: #{a2c_forward.7} parent=1 // pred_fallthru
      _
    // Predicated region
    $region38: #{a2c_forward.7} parent=1 // pred_check
      _
    $region39: #{a2c_forward.7} parent=1 // pred_check_branch
      %81 = sbr.rel (0) target = $region41
    $region40: #{a2c_forward.7} parent=1 // pred_region
      %82 = dma.done [#allocation9], 16
    $region41: #{a2c_forward.7} parent=1 // pred_fallthru
      _
    %v83 = vld [vmem:[#allocation2] sm:$0xff]
    %v84 = vld [vmem:[#allocation2 + $0x8] sm:$0xff]
    %v85 = vld [vmem:[#allocation5] sm:$0xff]
    %v86 = vld [vmem:[#allocation5 + $0x8] sm:$0xff]
    %v87 = vld [vmem:[#allocation5 + $0x10] sm:$0xff]
    %v88 = vld [vmem:[#allocation5 + $0x18] sm:$0xff]
    %v89 = vld [vmem:[#allocation5 + $0x20] sm:$0xff]
    %v90 = vld [vmem:[#allocation5 + $0x28] sm:$0xff]
    %v91 = vld [vmem:[#allocation5 + $0x30] sm:$0xff]
    %v92 = vld [vmem:[#allocation5 + $0x38] sm:$0xff]
    %v93 = vld [vmem:[#allocation5 + $0x40] sm:$0xff]
    %v94 = vld [vmem:[#allocation5 + $0x48] sm:$0xff]
    %v95 = vld [vmem:[#allocation5 + $0x50] sm:$0xff]
    %v96 = vld [vmem:[#allocation5 + $0x58] sm:$0xff]
    %v97 = vld [vmem:[#allocation5 + $0x60] sm:$0xff]
    %v98 = vld [vmem:[#allocation5 + $0x68] sm:$0xff]
    %v99 = vld [vmem:[#allocation5 + $0x70] sm:$0xff]
    %v100 = vld [vmem:[#allocation5 + $0x78] sm:$0xff]
    %v101 = vld [vmem:[#allocation5 + $0x80] sm:$0xff]
    %v102 = vld [vmem:[#allocation5 + $0x88] sm:$0xff]
    %v103 = vld [vmem:[#allocation5 + $0x90] sm:$0xff]
    %v104 = vld [vmem:[#allocation5 + $0x98] sm:$0xff]
    %v105 = vld [vmem:[#allocation5 + $0xa0] sm:$0xff]
    %v106 = vld [vmem:[#allocation5 + $0xa8] sm:$0xff]
    %v107 = vld [vmem:[#allocation5 + $0xb0] sm:$0xff]
    %v108 = vld [vmem:[#allocation5 + $0xb8] sm:$0xff]
    %v109 = vld [vmem:[#allocation5 + $0xc0] sm:$0xff]
    %v110 = vld [vmem:[#allocation5 + $0xc8] sm:$0xff]
    %v111 = vld [vmem:[#allocation5 + $0xd0] sm:$0xff]
    %v112 = vld [vmem:[#allocation5 + $0xd8] sm:$0xff]
    %v113 = vld [vmem:[#allocation5 + $0xe0] sm:$0xff]
    %v114 = vld [vmem:[#allocation5 + $0xe8] sm:$0xff]
    %v115 = vld [vmem:[#allocation5 + $0xf0] sm:$0xff]
    %v116 = vld [vmem:[#allocation5 + $0xf8] sm:$0xff]
    %v117 = vld [vmem:[#allocation5 + $0x100] sm:$0xff]
    %v118 = vld [vmem:[#allocation5 + $0x108] sm:$0xff]
    %v119 = vld [vmem:[#allocation5 + $0x110] sm:$0xff]
    %v120 = vld [vmem:[#allocation5 + $0x118] sm:$0xff]
    %v121 = vld [vmem:[#allocation5 + $0x120] sm:$0xff]
    %v122 = vld [vmem:[#allocation5 + $0x128] sm:$0xff]
    %v123 = vld [vmem:[#allocation5 + $0x130] sm:$0xff]
    %v124 = vld [vmem:[#allocation5 + $0x138] sm:$0xff]
    %v125 = vld [vmem:[#allocation5 + $0x140] sm:$0xff]
    %v126 = vld [vmem:[#allocation5 + $0x148] sm:$0xff]
    %v127 = vld [vmem:[#allocation5 + $0x150] sm:$0xff]
    %v128 = vld [vmem:[#allocation5 + $0x158] sm:$0xff]
    %v129 = vld [vmem:[#allocation5 + $0x160] sm:$0xff]
    %v130 = vld [vmem:[#allocation5 + $0x168] sm:$0xff]
    %v131 = vld [vmem:[#allocation5 + $0x170] sm:$0xff]
    %v132 = vld [vmem:[#allocation5 + $0x178] sm:$0xff]
    %v133 = vld [vmem:[#allocation5 + $0x180] sm:$0xff]
    %v134 = vld [vmem:[#allocation5 + $0x188] sm:$0xff]
    %v135 = vld [vmem:[#allocation5 + $0x190] sm:$0xff]
    %v136 = vld [vmem:[#allocation5 + $0x198] sm:$0xff]
    %v137 = vld [vmem:[#allocation5 + $0x1a0] sm:$0xff]
    %v138 = vld [vmem:[#allocation5 + $0x1a8] sm:$0xff]
    %v139 = vld [vmem:[#allocation5 + $0x1b0] sm:$0xff]
    %v140 = vld [vmem:[#allocation5 + $0x1b8] sm:$0xff]
    %v141 = vld [vmem:[#allocation5 + $0x1c0] sm:$0xff]
    %v142 = vld [vmem:[#allocation5 + $0x1c8] sm:$0xff]
    %v143 = vld [vmem:[#allocation5 + $0x1d0] sm:$0xff]
    %v144 = vld [vmem:[#allocation5 + $0x1d8] sm:$0xff]
    %v145 = vld [vmem:[#allocation5 + $0x1e0] sm:$0xff]
    %v146 = vld [vmem:[#allocation5 + $0x1e8] sm:$0xff]
    %v147 = vld [vmem:[#allocation5 + $0x1f0] sm:$0xff]
    %v148 = vld [vmem:[#allocation5 + $0x1f8] sm:$0xff]
    %v149 = vld [vmem:[#allocation5 + $0x200] sm:$0xff]
    %v150 = vld [vmem:[#allocation5 + $0x208] sm:$0xff]
    %v151 = vld [vmem:[#allocation5 + $0x210] sm:$0xff]
    %v152 = vld [vmem:[#allocation5 + $0x218] sm:$0xff]
    %v153 = vld [vmem:[#allocation5 + $0x220] sm:$0xff]
    %v154 = vld [vmem:[#allocation5 + $0x228] sm:$0xff]
    %v155 = vld [vmem:[#allocation5 + $0x230] sm:$0xff]
    %v156 = vld [vmem:[#allocation5 + $0x238] sm:$0xff]
    %v157 = vld [vmem:[#allocation5 + $0x240] sm:$0xff]
    %v158 = vld [vmem:[#allocation5 + $0x248] sm:$0xff]
    %v159 = vld [vmem:[#allocation5 + $0x250] sm:$0xff]
    %v160 = vld [vmem:[#allocation5 + $0x258] sm:$0xff]
    %v161 = vld [vmem:[#allocation5 + $0x260] sm:$0xff]
    %v162 = vld [vmem:[#allocation5 + $0x268] sm:$0xff]
    %v163 = vld [vmem:[#allocation5 + $0x270] sm:$0xff]
    %v164 = vld [vmem:[#allocation5 + $0x278] sm:$0xff]
    %v165 = vld [vmem:[#allocation5 + $0x280] sm:$0xff]
    %v166 = vld [vmem:[#allocation5 + $0x288] sm:$0xff]
    %v167 = vld [vmem:[#allocation5 + $0x290] sm:$0xff]
    %v168 = vld [vmem:[#allocation5 + $0x298] sm:$0xff]
    %v169 = vld [vmem:[#allocation5 + $0x2a0] sm:$0xff]
    %v170 = vld [vmem:[#allocation5 + $0x2a8] sm:$0xff]
    %v171 = vld [vmem:[#allocation5 + $0x2b0] sm:$0xff]
    %v172 = vld [vmem:[#allocation5 + $0x2b8] sm:$0xff]
    %v173 = vld [vmem:[#allocation5 + $0x2c0] sm:$0xff]
    %v174 = vld [vmem:[#allocation5 + $0x2c8] sm:$0xff]
    %v175 = vld [vmem:[#allocation5 + $0x2d0] sm:$0xff]
    %v176 = vld [vmem:[#allocation5 + $0x2d8] sm:$0xff]
    %v177 = vld [vmem:[#allocation5 + $0x2e0] sm:$0xff]
    %v178 = vld [vmem:[#allocation5 + $0x2e8] sm:$0xff]
    %v179 = vld [vmem:[#allocation5 + $0x2f0] sm:$0xff]
    %v180 = vld [vmem:[#allocation5 + $0x2f8] sm:$0xff]
    %v181 = vld [vmem:[#allocation5 + $0x300] sm:$0xff]
    %v182 = vld [vmem:[#allocation5 + $0x308] sm:$0xff]
    %v183 = vld [vmem:[#allocation5 + $0x310] sm:$0xff]
    %v184 = vld [vmem:[#allocation5 + $0x318] sm:$0xff]
    %v185 = vld [vmem:[#allocation5 + $0x320] sm:$0xff]
    %v186 = vld [vmem:[#allocation5 + $0x328] sm:$0xff]
    %v187 = vld [vmem:[#allocation5 + $0x330] sm:$0xff]
    %v188 = vld [vmem:[#allocation5 + $0x338] sm:$0xff]
    %v189 = vld [vmem:[#allocation5 + $0x340] sm:$0xff]
    %v190 = vld [vmem:[#allocation5 + $0x348] sm:$0xff]
    %v191 = vld [vmem:[#allocation5 + $0x350] sm:$0xff]
    %v192 = vld [vmem:[#allocation5 + $0x358] sm:$0xff]
    %v193 = vld [vmem:[#allocation5 + $0x360] sm:$0xff]
    %v194 = vld [vmem:[#allocation5 + $0x368] sm:$0xff]
    %v195 = vld [vmem:[#allocation5 + $0x370] sm:$0xff]
    %v196 = vld [vmem:[#allocation5 + $0x378] sm:$0xff]
    %v197 = vld [vmem:[#allocation5 + $0x380] sm:$0xff]
    %v198 = vld [vmem:[#allocation5 + $0x388] sm:$0xff]
    %v199 = vld [vmem:[#allocation5 + $0x390] sm:$0xff]
    %v200 = vld [vmem:[#allocation5 + $0x398] sm:$0xff]
    %v201 = vld [vmem:[#allocation5 + $0x3a0] sm:$0xff]
    %v202 = vld [vmem:[#allocation5 + $0x3a8] sm:$0xff]
    %v203 = vld [vmem:[#allocation5 + $0x3b0] sm:$0xff]
    %v204 = vld [vmem:[#allocation5 + $0x3b8] sm:$0xff]
    %v205 = vld [vmem:[#allocation5 + $0x3c0] sm:$0xff]
    %v206 = vld [vmem:[#allocation5 + $0x3c8] sm:$0xff]
    %v207 = vld [vmem:[#allocation5 + $0x3d0] sm:$0xff]
    %v208 = vld [vmem:[#allocation5 + $0x3d8] sm:$0xff]
    %v209 = vld [vmem:[#allocation5 + $0x3e0] sm:$0xff]
    %v210 = vld [vmem:[#allocation5 + $0x3e8] sm:$0xff]
    %v211 = vld [vmem:[#allocation5 + $0x3f0] sm:$0xff]
    %v212 = vld [vmem:[#allocation5 + $0x3f8] sm:$0xff]
    %v213 = vld [vmem:[#allocation7] sm:$0xf]
    %v215 = vlaneseq
    %v216 = vshrl.u32 %v215, 7
    %v217 = vsub.s32 0, %v216
    %v218 = vrot.slane %v213, %v217
    %v219 = vlaneseq
    %v220 = vshrl.u32 %v219, 7
    %v221 = vsub.s32 1, %v220
    %v222 = vrot.slane %v213, %v221
    %v223 = vlaneseq
    %v224 = vshrl.u32 %v223, 7
    %v225 = vsub.s32 2, %v224
    %v226 = vrot.slane %v213, %v225
    %v227 = vlaneseq
    %v228 = vshrl.u32 %v227, 7
    %v229 = vsub.s32 3, %v228
    %v230 = vrot.slane %v213, %v229
    %235 = vmatprep.subr.mxu0 %v86
    %236 = vmatpush1.msra.mxu0 %v85
    %237 = vmatprep.subr.mxu0 %v90
    %238 = vmatpush1.msra.mxu0 %v89
    %239 = vmatprep.subr.mxu0 %v94
    %240 = vmatpush1.msra.mxu0 %v93
    %241 = vmatprep.subr.mxu0 %v98
    %242 = vmatpush1.msra.mxu0 %v97
    %243 = vmatprep.subr.mxu0 %v102
    %244 = vmatpush1.msra.mxu0 %v101
    %245 = vmatprep.subr.mxu0 %v106
    %246 = vmatpush1.msra.mxu0 %v105
    %247 = vmatprep.subr.mxu0 %v110
    %248 = vmatpush1.msra.mxu0 %v109
    %249 = vmatprep.subr.mxu0 %v114
    %250 = vmatpush1.msra.mxu0 %v113
    %251 = vmatprep.subr.mxu0 %v118
    %252 = vmatpush1.msra.mxu0 %v117
    %253 = vmatprep.subr.mxu0 %v122
    %254 = vmatpush1.msra.mxu0 %v121
    %255 = vmatprep.subr.mxu0 %v126
    %256 = vmatpush1.msra.mxu0 %v125
    %257 = vmatprep.subr.mxu0 %v130
    %258 = vmatpush1.msra.mxu0 %v129
    %259 = vmatprep.subr.mxu0 %v134
    %260 = vmatpush1.msra.mxu0 %v133
    %261 = vmatprep.subr.mxu0 %v138
    %262 = vmatpush1.msra.mxu0 %v137
    %263 = vmatprep.subr.mxu0 %v142
    %264 = vmatpush1.msra.mxu0 %v141
    %265 = vmatprep.subr.mxu0 %v146
    %266 = vmatpush1.msra.mxu0 %v145
    %267 = vmatprep.subr.mxu0 %v150
    %268 = vmatpush1.msra.mxu0 %v149
    %269 = vmatprep.subr.mxu0 %v154
    %270 = vmatpush1.msra.mxu0 %v153
    %271 = vmatprep.subr.mxu0 %v158
    %272 = vmatpush1.msra.mxu0 %v157
    %273 = vmatprep.subr.mxu0 %v162
    %274 = vmatpush1.msra.mxu0 %v161
    %275 = vmatprep.subr.mxu0 %v166
    %276 = vmatpush1.msra.mxu0 %v165
    %277 = vmatprep.subr.mxu0 %v170
    %278 = vmatpush1.msra.mxu0 %v169
    %279 = vmatprep.subr.mxu0 %v174
    %280 = vmatpush1.msra.mxu0 %v173
    %281 = vmatprep.subr.mxu0 %v178
    %282 = vmatpush1.msra.mxu0 %v177
    %283 = vmatprep.subr.mxu0 %v182
    %284 = vmatpush1.msra.mxu0 %v181
    %285 = vmatprep.subr.mxu0 %v186
    %286 = vmatpush1.msra.mxu0 %v185
    %287 = vmatprep.subr.mxu0 %v190
    %288 = vmatpush1.msra.mxu0 %v189
    %289 = vmatprep.subr.mxu0 %v194
    %290 = vmatpush1.msra.mxu0 %v193
    %291 = vmatprep.subr.mxu0 %v198
    %292 = vmatpush1.msra.mxu0 %v197
    %293 = vmatprep.subr.mxu0 %v202
    %294 = vmatpush1.msra.mxu0 %v201
    %295 = vmatprep.subr.mxu0 %v206
    %296 = vmatpush1.msra.mxu0 %v205
    %297 = vmatprep.subr.mxu0 %v210
    %298 = vmatpush1.msra.mxu0 %v209
    %299 = vmatprep.mubr.f32.mxu0 %v84
    %300 = vmatmul.mubr.f32.gmra.mrb[0].mxu0 %v83
    %v301 = vpop.f32.mrb[0].mxu0
    %v302 = vadd.f32 %v218, %v301
    %v303 = vpop.f32.mrb[0].mxu0
    %v304 = vadd.f32 %v222, %v303
    %305 = vdwg.mxu0
    %306 = vmatprep.subr.mxu0 %v88
    %307 = vmatpush1.msra.mxu0 %v87
    %308 = vmatprep.subr.mxu0 %v92
    %309 = vmatpush1.msra.mxu0 %v91
    %310 = vmatprep.subr.mxu0 %v96
    %311 = vmatpush1.msra.mxu0 %v95
    %312 = vmatprep.subr.mxu0 %v100
    %313 = vmatpush1.msra.mxu0 %v99
    %314 = vmatprep.subr.mxu0 %v104
    %315 = vmatpush1.msra.mxu0 %v103
    %316 = vmatprep.subr.mxu0 %v108
    %317 = vmatpush1.msra.mxu0 %v107
    %318 = vmatprep.subr.mxu0 %v112
    %319 = vmatpush1.msra.mxu0 %v111
    %320 = vmatprep.subr.mxu0 %v116
    %321 = vmatpush1.msra.mxu0 %v115
    %322 = vmatprep.subr.mxu0 %v120
    %323 = vmatpush1.msra.mxu0 %v119
    %324 = vmatprep.subr.mxu0 %v124
    %325 = vmatpush1.msra.mxu0 %v123
    %326 = vmatprep.subr.mxu0 %v128
    %327 = vmatpush1.msra.mxu0 %v127
    %328 = vmatprep.subr.mxu0 %v132
    %329 = vmatpush1.msra.mxu0 %v131
    %330 = vmatprep.subr.mxu0 %v136
    %331 = vmatpush1.msra.mxu0 %v135
    %332 = vmatprep.subr.mxu0 %v140
    %333 = vmatpush1.msra.mxu0 %v139
    %334 = vmatprep.subr.mxu0 %v144
    %335 = vmatpush1.msra.mxu0 %v143
    %336 = vmatprep.subr.mxu0 %v148
    %337 = vmatpush1.msra.mxu0 %v147
    %338 = vmatprep.subr.mxu0 %v152
    %339 = vmatpush1.msra.mxu0 %v151
    %340 = vmatprep.subr.mxu0 %v156
    %341 = vmatpush1.msra.mxu0 %v155
    %342 = vmatprep.subr.mxu0 %v160
    %343 = vmatpush1.msra.mxu0 %v159
    %344 = vmatprep.subr.mxu0 %v164
    %345 = vmatpush1.msra.mxu0 %v163
    %346 = vmatprep.subr.mxu0 %v168
    %347 = vmatpush1.msra.mxu0 %v167
    %348 = vmatprep.subr.mxu0 %v172
    %349 = vmatpush1.msra.mxu0 %v171
    %350 = vmatprep.subr.mxu0 %v176
    %351 = vmatpush1.msra.mxu0 %v175
    %352 = vmatprep.subr.mxu0 %v180
    %353 = vmatpush1.msra.mxu0 %v179
    %354 = vmatprep.subr.mxu0 %v184
    %355 = vmatpush1.msra.mxu0 %v183
    %356 = vmatprep.subr.mxu0 %v188
    %357 = vmatpush1.msra.mxu0 %v187
    %358 = vmatprep.subr.mxu0 %v192
    %359 = vmatpush1.msra.mxu0 %v191
    %360 = vmatprep.subr.mxu0 %v196
    %361 = vmatpush1.msra.mxu0 %v195
    %362 = vmatprep.subr.mxu0 %v200
    %363 = vmatpush1.msra.mxu0 %v199
    %364 = vmatprep.subr.mxu0 %v204
    %365 = vmatpush1.msra.mxu0 %v203
    %366 = vmatprep.subr.mxu0 %v208
    %367 = vmatpush1.msra.mxu0 %v207
    %368 = vmatprep.subr.mxu0 %v212
    %369 = vmatpush1.msra.mxu0 %v211
    %370 = vmatprep.mubr.f32.mxu0 %v84
    %371 = vmatmul.mubr.f32.gmra.mrb[0].mxu0 %v83
    %v372 = vpop.f32.mrb[0].mxu0
    %v373 = vadd.f32 %v226, %v372
    %v374 = vpop.f32.mrb[0].mxu0
    %v375 = vadd.f32 %v230, %v374
    %376 = vdwg.mxu0
    %v377 = vmax.f32 %v302, 0.0
    %v378 = vmax.f32 %v304, 0.0
    %v379 = vmax.f32 %v373, 0.0
    %v380 = vmax.f32 %v375, 0.0
    %v381 = vld [vmem:[#allocation8] sm:$0xff]
    %v382 = vld [vmem:[#allocation8 + $0x8] sm:$0xff]
    %v383 = vld [vmem:[#allocation8 + $0x10] sm:$0xff]
    %v384 = vld [vmem:[#allocation8 + $0x18] sm:$0xff]
    %v385 = vld [vmem:[#allocation8 + $0x20] sm:$0xff]
    %v386 = vld [vmem:[#allocation8 + $0x28] sm:$0xff]
    %v387 = vld [vmem:[#allocation8 + $0x30] sm:$0xff]
    %v388 = vld [vmem:[#allocation8 + $0x38] sm:$0xff]
    %v389 = vld [vmem:[#allocation8 + $0x40] sm:$0xff]
    %v390 = vld [vmem:[#allocation8 + $0x48] sm:$0xff]
    %v391 = vld [vmem:[#allocation8 + $0x50] sm:$0xff]
    %v392 = vld [vmem:[#allocation8 + $0x58] sm:$0xff]
    %v393 = vld [vmem:[#allocation8 + $0x60] sm:$0xff]
    %v394 = vld [vmem:[#allocation8 + $0x68] sm:$0xff]
    %v395 = vld [vmem:[#allocation8 + $0x70] sm:$0xff]
    %v396 = vld [vmem:[#allocation8 + $0x78] sm:$0xff]
    %v397 = vld [vmem:[#allocation8 + $0x80] sm:$0xff]
    %v398 = vld [vmem:[#allocation8 + $0x88] sm:$0xff]
    %v399 = vld [vmem:[#allocation8 + $0x90] sm:$0xff]
    %v400 = vld [vmem:[#allocation8 + $0x98] sm:$0xff]
    %v401 = vld [vmem:[#allocation8 + $0xa0] sm:$0xff]
    %v402 = vld [vmem:[#allocation8 + $0xa8] sm:$0xff]
    %v403 = vld [vmem:[#allocation8 + $0xb0] sm:$0xff]
    %v404 = vld [vmem:[#allocation8 + $0xb8] sm:$0xff]
    %v405 = vld [vmem:[#allocation8 + $0xc0] sm:$0xff]
    %v406 = vld [vmem:[#allocation8 + $0xc8] sm:$0xff]
    %v407 = vld [vmem:[#allocation8 + $0xd0] sm:$0xff]
    %v408 = vld [vmem:[#allocation8 + $0xd8] sm:$0xff]
    %v409 = vld [vmem:[#allocation8 + $0xe0] sm:$0xff]
    %v410 = vld [vmem:[#allocation8 + $0xe8] sm:$0xff]
    %v411 = vld [vmem:[#allocation8 + $0xf0] sm:$0xff]
    %v412 = vld [vmem:[#allocation8 + $0xf8] sm:$0xff]
    %v413 = vld [vmem:[#allocation8 + $0x100] sm:$0xff]
    %v414 = vld [vmem:[#allocation8 + $0x108] sm:$0xff]
    %v415 = vld [vmem:[#allocation8 + $0x110] sm:$0xff]
    %v416 = vld [vmem:[#allocation8 + $0x118] sm:$0xff]
    %v417 = vld [vmem:[#allocation8 + $0x120] sm:$0xff]
    %v418 = vld [vmem:[#allocation8 + $0x128] sm:$0xff]
    %v419 = vld [vmem:[#allocation8 + $0x130] sm:$0xff]
    %v420 = vld [vmem:[#allocation8 + $0x138] sm:$0xff]
    %v421 = vld [vmem:[#allocation8 + $0x140] sm:$0xff]
    %v422 = vld [vmem:[#allocation8 + $0x148] sm:$0xff]
    %v423 = vld [vmem:[#allocation8 + $0x150] sm:$0xff]
    %v424 = vld [vmem:[#allocation8 + $0x158] sm:$0xff]
    %v425 = vld [vmem:[#allocation8 + $0x160] sm:$0xff]
    %v426 = vld [vmem:[#allocation8 + $0x168] sm:$0xff]
    %v427 = vld [vmem:[#allocation8 + $0x170] sm:$0xff]
    %v428 = vld [vmem:[#allocation8 + $0x178] sm:$0xff]
    %v429 = vld [vmem:[#allocation8 + $0x180] sm:$0xff]
    %v430 = vld [vmem:[#allocation8 + $0x188] sm:$0xff]
    %v431 = vld [vmem:[#allocation8 + $0x190] sm:$0xff]
    %v432 = vld [vmem:[#allocation8 + $0x198] sm:$0xff]
    %v433 = vld [vmem:[#allocation8 + $0x1a0] sm:$0xff]
    %v434 = vld [vmem:[#allocation8 + $0x1a8] sm:$0xff]
    %v435 = vld [vmem:[#allocation8 + $0x1b0] sm:$0xff]
    %v436 = vld [vmem:[#allocation8 + $0x1b8] sm:$0xff]
    %v437 = vld [vmem:[#allocation8 + $0x1c0] sm:$0xff]
    %v438 = vld [vmem:[#allocation8 + $0x1c8] sm:$0xff]
    %v439 = vld [vmem:[#allocation8 + $0x1d0] sm:$0xff]
    %v440 = vld [vmem:[#allocation8 + $0x1d8] sm:$0xff]
    %v441 = vld [vmem:[#allocation8 + $0x1e0] sm:$0xff]
    %v442 = vld [vmem:[#allocation8 + $0x1e8] sm:$0xff]
    %v443 = vld [vmem:[#allocation8 + $0x1f0] sm:$0xff]
    %v444 = vld [vmem:[#allocation8 + $0x1f8] sm:$0xff]
    %v445 = vld [vmem:[#allocation10] sm:$0x1]
    %v447 = vlaneseq
    %v448 = vshrl.u32 %v447, 7
    %v449 = vsub.s32 0, %v448
    %v450 = vrot.slane %v445, %v449
    %452 = vmatprep.subr.mxu0 0.0
    %453 = vmatpush1.msra.mxu0 %v381
    %454 = vmatprep.subr.mxu0 0.0
    %455 = vmatpush1.msra.mxu0 %v382
    %456 = vmatprep.subr.mxu0 0.0
    %457 = vmatpush1.msra.mxu0 %v383
    %458 = vmatprep.subr.mxu0 0.0
    %459 = vmatpush1.msra.mxu0 %v384
    %460 = vmatprep.subr.mxu0 0.0
    %461 = vmatpush1.msra.mxu0 %v385
    %462 = vmatprep.subr.mxu0 0.0
    %463 = vmatpush1.msra.mxu0 %v386
    %464 = vmatprep.subr.mxu0 0.0
    %465 = vmatpush1.msra.mxu0 %v387
    %466 = vmatprep.subr.mxu0 0.0
    %467 = vmatpush1.msra.mxu0 %v388
    %468 = vmatprep.subr.mxu0 0.0
    %469 = vmatpush1.msra.mxu0 %v389
    %470 = vmatprep.subr.mxu0 0.0
    %471 = vmatpush1.msra.mxu0 %v390
    %472 = vmatprep.subr.mxu0 0.0
    %473 = vmatpush1.msra.mxu0 %v391
    %474 = vmatprep.subr.mxu0 0.0
    %475 = vmatpush1.msra.mxu0 %v392
    %476 = vmatprep.subr.mxu0 0.0
    %477 = vmatpush1.msra.mxu0 %v393
    %478 = vmatprep.subr.mxu0 0.0
    %479 = vmatpush1.msra.mxu0 %v394
    %480 = vmatprep.subr.mxu0 0.0
    %481 = vmatpush1.msra.mxu0 %v395
    %482 = vmatprep.subr.mxu0 0.0
    %483 = vmatpush1.msra.mxu0 %v396
    %484 = vmatprep.subr.mxu0 0.0
    %485 = vmatpush1.msra.mxu0 %v397
    %486 = vmatprep.subr.mxu0 0.0
    %487 = vmatpush1.msra.mxu0 %v398
    %488 = vmatprep.subr.mxu0 0.0
    %489 = vmatpush1.msra.mxu0 %v399
    %490 = vmatprep.subr.mxu0 0.0
    %491 = vmatpush1.msra.mxu0 %v400
    %492 = vmatprep.subr.mxu0 0.0
    %493 = vmatpush1.msra.mxu0 %v401
    %494 = vmatprep.subr.mxu0 0.0
    %495 = vmatpush1.msra.mxu0 %v402
    %496 = vmatprep.subr.mxu0 0.0
    %497 = vmatpush1.msra.mxu0 %v403
    %498 = vmatprep.subr.mxu0 0.0
    %499 = vmatpush1.msra.mxu0 %v404
    %500 = vmatprep.subr.mxu0 0.0
    %501 = vmatpush1.msra.mxu0 %v405
    %502 = vmatprep.subr.mxu0 0.0
    %503 = vmatpush1.msra.mxu0 %v406
    %504 = vmatprep.subr.mxu0 0.0
    %505 = vmatpush1.msra.mxu0 %v407
    %506 = vmatprep.subr.mxu0 0.0
    %507 = vmatpush1.msra.mxu0 %v408
    %508 = vmatprep.subr.mxu0 0.0
    %509 = vmatpush1.msra.mxu0 %v409
    %510 = vmatprep.subr.mxu0 0.0
    %511 = vmatpush1.msra.mxu0 %v410
    %512 = vmatprep.subr.mxu0 0.0
    %513 = vmatpush1.msra.mxu0 %v411
    %514 = vmatprep.subr.mxu0 0.0
    %515 = vmatpush1.msra.mxu0 %v412
    %516 = vmatprep.mubr.f32.mxu0 %v378
    %517 = vmatmul.mubr.f32.gmra.mrb[0].mxu0 %v377
    %v518 = vpop.f32.mrb[0].mxu0
    %v519 = vadd.f32 %v450, %v518
    %v520 = vpop.f32.mrb[0].mxu0
    %521 = vdwg.mxu0
    %522 = vmatprep.subr.mxu0 0.0
    %523 = vmatpush1.msra.mxu0 %v413
    %524 = vmatprep.subr.mxu0 0.0
    %525 = vmatpush1.msra.mxu0 %v414
    %526 = vmatprep.subr.mxu0 0.0
    %527 = vmatpush1.msra.mxu0 %v415
    %528 = vmatprep.subr.mxu0 0.0
    %529 = vmatpush1.msra.mxu0 %v416
    %530 = vmatprep.subr.mxu0 0.0
    %531 = vmatpush1.msra.mxu0 %v417
    %532 = vmatprep.subr.mxu0 0.0
    %533 = vmatpush1.msra.mxu0 %v418
    %534 = vmatprep.subr.mxu0 0.0
    %535 = vmatpush1.msra.mxu0 %v419
    %536 = vmatprep.subr.mxu0 0.0
    %537 = vmatpush1.msra.mxu0 %v420
    %538 = vmatprep.subr.mxu0 0.0
    %539 = vmatpush1.msra.mxu0 %v421
    %540 = vmatprep.subr.mxu0 0.0
    %541 = vmatpush1.msra.mxu0 %v422
    %542 = vmatprep.subr.mxu0 0.0
    %543 = vmatpush1.msra.mxu0 %v423
    %544 = vmatprep.subr.mxu0 0.0
    %545 = vmatpush1.msra.mxu0 %v424
    %546 = vmatprep.subr.mxu0 0.0
    %547 = vmatpush1.msra.mxu0 %v425
    %548 = vmatprep.subr.mxu0 0.0
    %549 = vmatpush1.msra.mxu0 %v426
    %550 = vmatprep.subr.mxu0 0.0
    %551 = vmatpush1.msra.mxu0 %v427
    %552 = vmatprep.subr.mxu0 0.0
    %553 = vmatpush1.msra.mxu0 %v428
    %554 = vmatprep.subr.mxu0 0.0
    %555 = vmatpush1.msra.mxu0 %v429
    %556 = vmatprep.subr.mxu0 0.0
    %557 = vmatpush1.msra.mxu0 %v430
    %558 = vmatprep.subr.mxu0 0.0
    %559 = vmatpush1.msra.mxu0 %v431
    %560 = vmatprep.subr.mxu0 0.0
    %561 = vmatpush1.msra.mxu0 %v432
    %562 = vmatprep.subr.mxu0 0.0
    %563 = vmatpush1.msra.mxu0 %v433
    %564 = vmatprep.subr.mxu0 0.0
    %565 = vmatpush1.msra.mxu0 %v434
    %566 = vmatprep.subr.mxu0 0.0
    %567 = vmatpush1.msra.mxu0 %v435
    %568 = vmatprep.subr.mxu0 0.0
    %569 = vmatpush1.msra.mxu0 %v436
    %570 = vmatprep.subr.mxu0 0.0
    %571 = vmatpush1.msra.mxu0 %v437
    %572 = vmatprep.subr.mxu0 0.0
    %573 = vmatpush1.msra.mxu0 %v438
    %574 = vmatprep.subr.mxu0 0.0
    %575 = vmatpush1.msra.mxu0 %v439
    %576 = vmatprep.subr.mxu0 0.0
    %577 = vmatpush1.msra.mxu0 %v440
    %578 = vmatprep.subr.mxu0 0.0
    %579 = vmatpush1.msra.mxu0 %v441
    %580 = vmatprep.subr.mxu0 0.0
    %581 = vmatpush1.msra.mxu0 %v442
    %582 = vmatprep.subr.mxu0 0.0
    %583 = vmatpush1.msra.mxu0 %v443
    %584 = vmatprep.subr.mxu0 0.0
    %585 = vmatpush1.msra.mxu0 %v444
    %586 = vmatprep.mubr.f32.mxu0 %v380
    %587 = vmatmul.mubr.f32.gmra.mrb[0].mxu0 %v379
    %v588 = vpop.f32.mrb[0].mxu0
    %v589 = vadd.f32 %v519, %v588
    %v590 = vpop.f32.mrb[0].mxu0
    %591 = vdwg.mxu0
    %592 = vst [vmem:[#allocation11] sm:$0xff] %v589
    // Predicated region
    $region42: #{a2c_forward.7} parent=1 // pred_check
      _
    $region43: #{a2c_forward.7} parent=1 // pred_check_branch
      %594 = sbr.rel (0) target = $region45
    $region44: #{a2c_forward.7} parent=1 // pred_region
      %s596 = ssub.s32 128, 128
      %597 = vsyncadd [#allocation4], %s596
      %s599 = sshll.u32 [#allocation11], 4
      %s600 = int_to_ptr.vmem [resolvable:$true] %s599
      %602 = dma.vmem_to_hbm [thread:$0]  %s600, 128, %s5, [#allocation4]
    $region45: #{a2c_forward.7} parent=1 // pred_fallthru
      _
    // Predicated region
    $region46: #{a2c_forward.7} parent=1 // pred_check
      _
    $region47: #{a2c_forward.7} parent=1 // pred_check_branch
      %604 = sbr.rel (0) target = $region49
    $region48: #{a2c_forward.7} parent=1 // pred_region
      %605 = dma.done [#allocation4], 128
    $region49: #{a2c_forward.7} parent=1 // pred_fallthru
      _
    %606 = vsyncpa [#allocation3], 1
    %607 = vsyncpa [#allocation6], 1
    %608 = vsyncpa [#allocation9], 1
    %609 = vsyncpa [#allocation4], 1

</llo_original>
